<compile_context>
chip_gen: v6e
topology: v6e:2x2x1
jax: 0.10.0
libtpu: 0.0.40
codegen_flags: <defaults>
</compile_context>

<pallas_src>
import jax
import jax.numpy as jnp
from jax.experimental import pallas as pl
from jax.experimental.pallas import tpu as pltpu

BP = 8  # batch rows padded to the f32 sublane tile


def _make_kernel(n_dense, S, Bp, Hp):
    """Fused forward kernel for a fixed MLP depth and static shapes."""

    def kernel(*refs):
        x_ref = refs[0]                       # (S*Bp, Cp) f32, time-major rows
        d0w_ref, d0b_ref = refs[1], refs[2]   # (Cp, Cp) bf16, (1, Cp) f32
        wih_ref, whh_ref = refs[3], refs[4]   # (Cp, 3Hp) bf16, (Hp, 3Hp) bf16
        bih_ref = refs[5]                     # (1, 3Hp) f32 (b_hh r/z folded in)
        bhhn_ref = refs[6]                    # (1, Hp)  f32 (n-gate hidden bias)
        dense_refs = refs[7:7 + 2 * n_dense]  # (w bf16 (128,128), b f32 (1,128))
        out_ref = refs[7 + 2 * n_dense]       # (Bp, 128) f32

        x = x_ref[...]                                            # f32

        # ---- hoisted, time-invariant matmuls (amortized over all steps) ----
        # x = relu(x + d0(x)); padded lanes/rows stay exactly 0.
        a = jnp.maximum(
            x
            + jnp.dot(x.astype(jnp.bfloat16), d0w_ref[...],
                      preferred_element_type=jnp.float32)
            + d0b_ref[...],
            0.0)                                                  # (S*Bp, Cp)
        # GRU input projection for every timestep, gate-padded layout.
        gx = jnp.dot(a.astype(jnp.bfloat16), wih_ref[...],
                     preferred_element_type=jnp.float32) + bih_ref[...]

        whh = whh_ref[...]
        # Hoist the only surviving per-step bias broadcast out of the loop.
        bhh_n = jnp.broadcast_to(bhhn_ref[...], (Bp, Hp))         # (Bp, Hp)

        # ---- recurrence: only h @ W_hh stays on the serial chain -----------
        # Fully unrolled (S static & small): tile-aligned static sublane
        # slices + full cross-iteration visibility for the scheduler.
        h = jnp.zeros((Bp, Hp), jnp.float32)
        for t in range(S):
            gxt = gx[t * Bp:(t + 1) * Bp, :]                      # (Bp, 3Hp)
            gh = jnp.dot(h.astype(jnp.bfloat16), whh,
                         preferred_element_type=jnp.float32)
            # torch.nn.GRU gate order [r, z, n]; each gate sits on its own
            # 128-lane-aligned block -> free view slices.
            r = jax.nn.sigmoid(gxt[:, 0:Hp] + gh[:, 0:Hp])
            z = jax.nn.sigmoid(gxt[:, Hp:2 * Hp] + gh[:, Hp:2 * Hp])
            n = jnp.tanh(gxt[:, 2 * Hp:3 * Hp]
                         + r * (gh[:, 2 * Hp:3 * Hp] + bhh_n))
            h = (1.0 - z) * n + z * h                             # f32 math

        # lstm(x)[0][:, -1, :] == final hidden state of the single-layer GRU.
        # ---- MLP head: ReLU after every dense layer except the last --------
        # TODO(synk): Dropout(0.2) is train-mode only; eval-mode identity here.
        y = h
        for i in range(n_dense):
            w = dense_refs[2 * i][...]
            b = dense_refs[2 * i + 1][...]
            y = jnp.dot(y.astype(jnp.bfloat16), w,
                        preferred_element_type=jnp.float32) + b
            if i < n_dense - 1:
                y = jnp.maximum(y, 0.0)
        out_ref[...] = y.astype(out_ref.dtype)

    return kernel


def _pad_gate_cols(w, H, Hp):
    """(fan_in, 3H) -> (fan_in, 3*Hp): each gate zero-padded to Hp lanes."""
    fan_in = w.shape[0]
    w3 = w.reshape(fan_in, 3, H)
    return (jnp.zeros((fan_in, 3, Hp), w.dtype).at[..., :H].set(w3)
            .reshape(fan_in, 3 * Hp))


def _pad2(a, rows, cols):
    """Zero-pad a 2-D array up to (rows, cols)."""
    out = jnp.zeros((rows, cols), a.dtype)
    return out.at[:a.shape[0], :a.shape[1]].set(a)


def classifier_rnn_forward(x, params, gnn_output_dim):
    B, two, SG = x.shape
    assert two == 2 and SG % gnn_output_dim == 0
    G = gnn_output_dim
    S = SG // G
    G2 = 2 * G
    H = params["whh"].shape[0]
    Hp = ((H + 127) // 128) * 128           # each gate on full lane tile(s)
    Cp = ((G2 + 127) // 128) * 128          # lane-dense input width
    Bp = BP                                 # sublane-tile batch pad
    assert B <= Bp, "pad to a multiple of 8 / tile the batch for larger B"
    dense = params["dense"]
    n_dense = len(dense)
    out_dim = dense[-1][0].shape[1]

    # torch.stack(torch.split(x, G, -1), 1).flatten(-2) -> (B, S, 2G),
    # batch-padded to Bp=8 and lane-padded to Cp, then time-major rows
    # (row index = t*Bp + b) so the hoisted matmuls run over one operand and
    # per-step slices are sublane-tile aligned.
    x_seq = x.reshape(B, 2, S, G).transpose(0, 2, 1, 3).reshape(B, S, G2)
    x_seq = x_seq.astype(jnp.float32)
    x_pad = jnp.zeros((Bp, S, Cp), jnp.float32).at[:B, :, :G2].set(x_seq)
    x_rows = jnp.transpose(x_pad, (1, 0, 2)).reshape(S * Bp, Cp)

    # Lane-dense d0 (residual) weights.
    d0w_p = _pad2(params["d0_w"], Cp, Cp).astype(jnp.bfloat16)
    d0b_p = _pad2(params["d0_b"], 1, Cp).astype(jnp.float32)

    # Gate-padded, bf16 MXU-operand GRU weight packing (done once, outside
    # the kernel; also halves the HBM->VMEM traffic for the weights).
    wih_p = _pad2(_pad_gate_cols(params["wih"], H, Hp), Cp, 3 * Hp)
    whh_p = _pad2(_pad_gate_cols(params["whh"], H, Hp), Hp, 3 * Hp)
    bih_p = _pad_gate_cols(params["bih"], H, Hp)                   # (1, 3Hp)
    bhh_p = _pad_gate_cols(params["bhh"], H, Hp)
    # Fold the r/z thirds of b_hh into b_ih (off the serial chain).  The
    # n-gate third must stay inside r*(W_hn h + b_hn) -> passed separately.
    bih_p = bih_p.at[:, :2 * Hp].add(bhh_p[:, :2 * Hp])
    bhh_n = bhh_p[:, 2 * Hp:3 * Hp]                                # (1, Hp)

    # MLP head: every layer padded to full (128-in, 128-out) lane tiles so no
    # intermediate activation lives in a masked sub-128 layout.
    dense_p = []
    prev_out_p = Hp
    for w, b in dense:
        cols = ((w.shape[1] + 127) // 128) * 128
        dense_p.append((_pad2(w, prev_out_p, cols).astype(jnp.bfloat16),
                        _pad2(b, 1, cols).astype(jnp.float32)))
        prev_out_p = cols
    P_out = prev_out_p                      # lane-dense output slab width

    flat_inputs = [x_rows,
                   d0w_p, d0b_p,
                   wih_p.astype(jnp.bfloat16), whh_p.astype(jnp.bfloat16),
                   bih_p.astype(jnp.float32), bhh_n.astype(jnp.float32)]
    for w, b in dense_p:
        flat_inputs += [w, b]

    def full_spec(shape):
        nd = len(shape)
        return pl.BlockSpec(shape, lambda i, _nd=nd: (0,) * _nd)

    # NOTE(scale-up): today the whole kernel is well under 1 MiB resident, so
    # VMEM / HBM bandwidth are non-issues on all generations and there is
    # nothing to pipeline at grid=(1,).  When B / S / G / H grow:
    #   * budget against v7x's 64 MiB VMEM (not v6e's 128 MiB), remembering
    #     BlockSpec double-buffers each input (or use pipeline_mode=
    #     pl.Buffered(1) on weights that fit resident);
    #   * tile the hoisted x -> a -> gx precompute over a leading "parallel"
    #     batch grid axis so both v7x TensorCores are used, and carry h in a
    #     VMEM scratch accumulator across an "arbitrary" sequence axis;
    #   * the per-gate Hp padding inflates whh/gx by ~(128/H per gate)x when
    #     H is not a multiple of 128 -- re-derive the tile size for v7x first.
    kernel = _make_kernel(n_dense, S, Bp, Hp)
    out = pl.pallas_call(
        kernel,
        out_shape=jax.ShapeDtypeStruct((Bp, P_out), jnp.float32),
        grid=(1,),
        in_specs=[full_spec(a.shape) for a in flat_inputs],
        out_specs=full_spec((Bp, P_out)),
        compiler_params=pltpu.CompilerParams(
            dimension_semantics=("arbitrary",)),
    )(*flat_inputs)
    return out[:B, :out_dim]


def _init_linear(key, fan_in, fan_out, scale=0.1):
    kw, kb = jax.random.split(key)
    w = jax.random.normal(kw, (fan_in, fan_out), jnp.float32) * scale
    b = jax.random.normal(kb, (1, fan_out), jnp.float32) * scale
    return w, b


def init_params(key, dims, gnn_output_dim):
    G2 = 2 * gnn_output_dim
    H = dims[1]
    depth = len(dims) - 1
    keys = jax.random.split(key, depth + 4)

    d0_w, d0_b = _init_linear(keys[0], G2, G2)
    kih, khh = jax.random.split(keys[1])
    kbih, kbhh = jax.random.split(keys[2])
    wih = jax.random.normal(kih, (G2, 3 * H), jnp.float32) * 0.1
    whh = jax.random.normal(khh, (H, 3 * H), jnp.float32) * 0.1
    bih = jax.random.normal(kbih, (1, 3 * H), jnp.float32) * 0.1
    bhh = jax.random.normal(kbhh, (1, 3 * H), jnp.float32) * 0.1

    # dense_layers: Linear(dims[i], dims[i+1]) for i = 1..depth-2, then the
    # final Linear(dims[-2], dims[-1])  -> depth-1 layers total (chained).
    dense = []
    for i in range(1, depth):
        dense.append(_init_linear(keys[3 + i], dims[i], dims[i + 1]))

    return {"d0_w": d0_w, "d0_b": d0_b, "wih": wih, "whh": whh,
            "bih": bih, "bhh": bhh, "dense": dense}


def reference_forward(x, params, gnn_output_dim, *, bf16_matmuls=False):
    """Pure-JAX replica of Classifier_RNN.forward (eval mode).

    bf16_matmuls=True mirrors the kernel's bf16-operand / f32-accumulate MXU
    policy so it can be compared with a tight tolerance; False is the pure
    f32 PyTorch-equivalent math."""
    def mm(a, w):
        if bf16_matmuls:
            a = a.astype(jnp.bfloat16)
            w = w.astype(jnp.bfloat16)
        return jnp.dot(a, w, preferred_element_type=jnp.float32)

    B, _, SG = x.shape
    G = gnn_output_dim
    S = SG // G
    G2 = 2 * G
    H = params["whh"].shape[0]

    xs = x.reshape(B, 2, S, G).transpose(0, 2, 1, 3).reshape(B, S, G2)
    a = jax.nn.relu(xs + mm(xs, params["d0_w"]) + params["d0_b"])

    h = jnp.zeros((B, H), jnp.float32)
    for t in range(S):
        gx = mm(a[:, t, :], params["wih"]) + params["bih"]
        gh = mm(h, params["whh"]) + params["bhh"]
        r = jax.nn.sigmoid(gx[:, :H] + gh[:, :H])
        z = jax.nn.sigmoid(gx[:, H:2 * H] + gh[:, H:2 * H])
        n = jnp.tanh(gx[:, 2 * H:] + r * gh[:, 2 * H:])
        h = (1.0 - z) * n + z * h

    y = h
    n_dense = len(params["dense"])
    for i, (w, b) in enumerate(params["dense"]):
        y = mm(y, w) + b
        if i < n_dense - 1:
            y = jax.nn.relu(y)
    return y


if __name__ == "__main__":
    B, S, G = 2, 8, 16                  # batch, seq-len, gnn_output_dim
    dims = [64, 32, 32, 32, 16, 16, 4]  # depth = 6, GRU hidden = dims[1] = 32

    key = jax.random.PRNGKey(0)
    kx, kp = jax.random.split(key)
    x = jax.random.normal(kx, (B, 2, S * G), jnp.float32)
    params = init_params(kp, dims, G)

    out = jax.block_until_ready(classifier_rnn_forward(x, params, G))
    assert out.shape == (B, dims[-1]), out.shape

    # Tight check vs a reference mirroring the kernel's bf16-operand MXU
    # policy, plus a sanity check vs the pure-f32 module math.
    ref_bf16 = reference_forward(x, params, G, bf16_matmuls=True)
    ref_f32 = reference_forward(x, params, G, bf16_matmuls=False)
    assert jnp.allclose(out, ref_bf16, rtol=1e-2, atol=1e-2), (out, ref_bf16)
    assert jnp.allclose(out, ref_f32, rtol=5e-2, atol=5e-2), (out, ref_f32)
    print("KERNEL_OK")
</pallas_src>

<mosaic_0001>
module attributes {stable_mosaic.version = 11 : i64} {
  func.func @kernel(%arg0: i32, %arg1: memref<64x128xf32, #tpu.memory_space<vmem>>, %arg2: memref<128x128xbf16, #tpu.memory_space<vmem>>, %arg3: memref<1x128xf32, #tpu.memory_space<vmem>>, %arg4: memref<128x384xbf16, #tpu.memory_space<vmem>>, %arg5: memref<128x384xbf16, #tpu.memory_space<vmem>>, %arg6: memref<1x384xf32, #tpu.memory_space<vmem>>, %arg7: memref<1x128xf32, #tpu.memory_space<vmem>>, %arg8: memref<128x128xbf16, #tpu.memory_space<vmem>>, %arg9: memref<1x128xf32, #tpu.memory_space<vmem>>, %arg10: memref<128x128xbf16, #tpu.memory_space<vmem>>, %arg11: memref<1x128xf32, #tpu.memory_space<vmem>>, %arg12: memref<128x128xbf16, #tpu.memory_space<vmem>>, %arg13: memref<1x128xf32, #tpu.memory_space<vmem>>, %arg14: memref<128x128xbf16, #tpu.memory_space<vmem>>, %arg15: memref<1x128xf32, #tpu.memory_space<vmem>>, %arg16: memref<128x128xbf16, #tpu.memory_space<vmem>>, %arg17: memref<1x128xf32, #tpu.memory_space<vmem>>, %arg18: memref<8x128xf32, #tpu.memory_space<vmem>>) attributes {dimension_semantics = [#tpu.dimension_semantics<arbitrary>], iteration_bounds = array<i64: 1>, scalar_prefetch = 0 : i64, scratch_operands = 0 : i64, tpu.core_type = #tpu.core_type<tc>, window_params = [{pipeline_mode = #tpu.pipeline_mode<synchronous>, transform_indices = @transform_0, window_bounds = array<i64: 64, 128>}, {pipeline_mode = #tpu.pipeline_mode<synchronous>, transform_indices = @transform_1, window_bounds = array<i64: 128, 128>}, {pipeline_mode = #tpu.pipeline_mode<synchronous>, transform_indices = @transform_2, window_bounds = array<i64: 1, 128>}, {pipeline_mode = #tpu.pipeline_mode<synchronous>, transform_indices = @transform_3, window_bounds = array<i64: 128, 384>}, {pipeline_mode = #tpu.pipeline_mode<synchronous>, transform_indices = @transform_4, window_bounds = array<i64: 128, 384>}, {pipeline_mode = #tpu.pipeline_mode<synchronous>, transform_indices = @transform_5, window_bounds = array<i64: 1, 384>}, {pipeline_mode = #tpu.pipeline_mode<synchronous>, transform_indices = @transform_6, window_bounds = array<i64: 1, 128>}, {pipeline_mode = #tpu.pipeline_mode<synchronous>, transform_indices = @transform_7, window_bounds = array<i64: 128, 128>}, {pipeline_mode = #tpu.pipeline_mode<synchronous>, transform_indices = @transform_8, window_bounds = array<i64: 1, 128>}, {pipeline_mode = #tpu.pipeline_mode<synchronous>, transform_indices = @transform_9, window_bounds = array<i64: 128, 128>}, {pipeline_mode = #tpu.pipeline_mode<synchronous>, transform_indices = @transform_10, window_bounds = array<i64: 1, 128>}, {pipeline_mode = #tpu.pipeline_mode<synchronous>, transform_indices = @transform_11, window_bounds = array<i64: 128, 128>}, {pipeline_mode = #tpu.pipeline_mode<synchronous>, transform_indices = @transform_12, window_bounds = array<i64: 1, 128>}, {pipeline_mode = #tpu.pipeline_mode<synchronous>, transform_indices = @transform_13, window_bounds = array<i64: 128, 128>}, {pipeline_mode = #tpu.pipeline_mode<synchronous>, transform_indices = @transform_14, window_bounds = array<i64: 1, 128>}, {pipeline_mode = #tpu.pipeline_mode<synchronous>, transform_indices = @transform_15, window_bounds = array<i64: 128, 128>}, {pipeline_mode = #tpu.pipeline_mode<synchronous>, transform_indices = @transform_16, window_bounds = array<i64: 1, 128>}, {pipeline_mode = #tpu.pipeline_mode<synchronous>, transform_indices = @transform_17, window_bounds = array<i64: 8, 128>}]} {
    %c0 = arith.constant 0 : index
    %c0_0 = arith.constant 0 : index
    %0 = vector.load %arg1[%c0, %c0_0] : memref<64x128xf32, #tpu.memory_space<vmem>>, vector<64x128xf32>
    %1 = arith.truncf %0 : vector<64x128xf32> to vector<64x128xbf16>
    %c0_1 = arith.constant 0 : index
    %c0_2 = arith.constant 0 : index
    %2 = vector.load %arg2[%c0_1, %c0_2] : memref<128x128xbf16, #tpu.memory_space<vmem>>, vector<128x128xbf16>
    %cst = arith.constant dense<0.000000e+00> : vector<64x128xf32>
    %3 = tpu.matmul %1, %2, %cst {dimension_numbers = #tpu.dot_dimension_numbers<[1], [0], [0], [1], [0, 0, 1, 1], [], []>} : vector<64x128xbf16>, vector<128x128xbf16>, vector<64x128xf32> -> vector<64x128xf32>
    %4 = arith.addf %0, %3 : vector<64x128xf32>
    %c0_3 = arith.constant 0 : index
    %c0_4 = arith.constant 0 : index
    %5 = vector.load %arg3[%c0_3, %c0_4] : memref<1x128xf32, #tpu.memory_space<vmem>>, vector<1x128xf32>
    %6 = vector.broadcast %5 : vector<1x128xf32> to vector<64x128xf32>
    %7 = arith.addf %4, %6 : vector<64x128xf32>
    %cst_5 = arith.constant 0.000000e+00 : f32
    %8 = vector.broadcast %cst_5 : f32 to vector<64x128xf32>
    %9 = arith.maximumf %7, %8 : vector<64x128xf32>
    %10 = arith.truncf %9 : vector<64x128xf32> to vector<64x128xbf16>
    %c0_6 = arith.constant 0 : index
    %c0_7 = arith.constant 0 : index
    %11 = vector.load %arg4[%c0_6, %c0_7] : memref<128x384xbf16, #tpu.memory_space<vmem>>, vector<128x384xbf16>
    %cst_8 = arith.constant dense<0.000000e+00> : vector<64x384xf32>
    %12 = tpu.matmul %10, %11, %cst_8 {dimension_numbers = #tpu.dot_dimension_numbers<[1], [0], [0], [1], [0, 0, 1, 1], [], []>} : vector<64x128xbf16>, vector<128x384xbf16>, vector<64x384xf32> -> vector<64x384xf32>
    %c0_9 = arith.constant 0 : index
    %c0_10 = arith.constant 0 : index
    %13 = vector.load %arg6[%c0_9, %c0_10] : memref<1x384xf32, #tpu.memory_space<vmem>>, vector<1x384xf32>
    %14 = vector.broadcast %13 : vector<1x384xf32> to vector<64x384xf32>
    %15 = arith.addf %12, %14 : vector<64x384xf32>
    %c0_11 = arith.constant 0 : index
    %c0_12 = arith.constant 0 : index
    %16 = vector.load %arg5[%c0_11, %c0_12] : memref<128x384xbf16, #tpu.memory_space<vmem>>, vector<128x384xbf16>
    %c0_13 = arith.constant 0 : index
    %c0_14 = arith.constant 0 : index
    %17 = vector.load %arg7[%c0_13, %c0_14] : memref<1x128xf32, #tpu.memory_space<vmem>>, vector<1x128xf32>
    %18 = vector.shape_cast %17 : vector<1x128xf32> to vector<1x128xf32>
    %19 = vector.broadcast %18 : vector<1x128xf32> to vector<8x128xf32>
    %cst_15 = arith.constant 0.000000e+00 : f32
    %20 = vector.broadcast %cst_15 : f32 to vector<8x128xf32>
    %21 = vector.extract_strided_slice %15 {offsets = [0, 0], sizes = [8, 384], strides = [1, 1]} : vector<64x384xf32> to vector<8x384xf32>
    %22 = arith.truncf %20 : vector<8x128xf32> to vector<8x128xbf16>
    %cst_16 = arith.constant dense<0.000000e+00> : vector<8x384xf32>
    %23 = tpu.matmul %22, %16, %cst_16 {dimension_numbers = #tpu.dot_dimension_numbers<[1], [0], [0], [1], [0, 0, 1, 1], [], []>} : vector<8x128xbf16>, vector<128x384xbf16>, vector<8x384xf32> -> vector<8x384xf32>
    %24 = vector.extract_strided_slice %21 {offsets = [0, 0], sizes = [8, 128], strides = [1, 1]} : vector<8x384xf32> to vector<8x128xf32>
    %25 = vector.extract_strided_slice %23 {offsets = [0, 0], sizes = [8, 128], strides = [1, 1]} : vector<8x384xf32> to vector<8x128xf32>
    %26 = arith.addf %24, %25 : vector<8x128xf32>
    %27 = arith.negf %26 : vector<8x128xf32>
    %28 = math.exp %27 : vector<8x128xf32>
    %cst_17 = arith.constant 1.000000e+00 : f32
    %29 = vector.broadcast %cst_17 : f32 to vector<8x128xf32>
    %30 = arith.addf %29, %28 : vector<8x128xf32>
    %31 = arith.divf %29, %30 : vector<8x128xf32>
    %32 = vector.extract_strided_slice %21 {offsets = [0, 128], sizes = [8, 128], strides = [1, 1]} : vector<8x384xf32> to vector<8x128xf32>
    %33 = vector.extract_strided_slice %23 {offsets = [0, 128], sizes = [8, 128], strides = [1, 1]} : vector<8x384xf32> to vector<8x128xf32>
    %34 = arith.addf %32, %33 : vector<8x128xf32>
    %35 = arith.negf %34 : vector<8x128xf32>
    %36 = math.exp %35 : vector<8x128xf32>
    %cst_18 = arith.constant 1.000000e+00 : f32
    %37 = vector.broadcast %cst_18 : f32 to vector<8x128xf32>
    %38 = arith.addf %37, %36 : vector<8x128xf32>
    %39 = arith.divf %37, %38 : vector<8x128xf32>
    %40 = vector.extract_strided_slice %21 {offsets = [0, 256], sizes = [8, 128], strides = [1, 1]} : vector<8x384xf32> to vector<8x128xf32>
    %41 = vector.extract_strided_slice %23 {offsets = [0, 256], sizes = [8, 128], strides = [1, 1]} : vector<8x384xf32> to vector<8x128xf32>
    %42 = arith.addf %41, %19 : vector<8x128xf32>
    %43 = arith.mulf %31, %42 : vector<8x128xf32>
    %44 = arith.addf %40, %43 : vector<8x128xf32>
    %45 = math.tanh %44 : vector<8x128xf32>
    %cst_19 = arith.constant 1.000000e+00 : f32
    %46 = vector.broadcast %cst_19 : f32 to vector<8x128xf32>
    %47 = arith.subf %46, %39 : vector<8x128xf32>
    %48 = arith.mulf %47, %45 : vector<8x128xf32>
    %49 = arith.mulf %39, %20 : vector<8x128xf32>
    %50 = arith.addf %48, %49 : vector<8x128xf32>
    %51 = vector.extract_strided_slice %15 {offsets = [8, 0], sizes = [8, 384], strides = [1, 1]} : vector<64x384xf32> to vector<8x384xf32>
    %52 = arith.truncf %50 : vector<8x128xf32> to vector<8x128xbf16>
    %cst_20 = arith.constant dense<0.000000e+00> : vector<8x384xf32>
    %53 = tpu.matmul %52, %16, %cst_20 {dimension_numbers = #tpu.dot_dimension_numbers<[1], [0], [0], [1], [0, 0, 1, 1], [], []>} : vector<8x128xbf16>, vector<128x384xbf16>, vector<8x384xf32> -> vector<8x384xf32>
    %54 = vector.extract_strided_slice %51 {offsets = [0, 0], sizes = [8, 128], strides = [1, 1]} : vector<8x384xf32> to vector<8x128xf32>
    %55 = vector.extract_strided_slice %53 {offsets = [0, 0], sizes = [8, 128], strides = [1, 1]} : vector<8x384xf32> to vector<8x128xf32>
    %56 = arith.addf %54, %55 : vector<8x128xf32>
    %57 = arith.negf %56 : vector<8x128xf32>
    %58 = math.exp %57 : vector<8x128xf32>
    %cst_21 = arith.constant 1.000000e+00 : f32
    %59 = vector.broadcast %cst_21 : f32 to vector<8x128xf32>
    %60 = arith.addf %59, %58 : vector<8x128xf32>
    %61 = arith.divf %59, %60 : vector<8x128xf32>
    %62 = vector.extract_strided_slice %51 {offsets = [0, 128], sizes = [8, 128], strides = [1, 1]} : vector<8x384xf32> to vector<8x128xf32>
    %63 = vector.extract_strided_slice %53 {offsets = [0, 128], sizes = [8, 128], strides = [1, 1]} : vector<8x384xf32> to vector<8x128xf32>
    %64 = arith.addf %62, %63 : vector<8x128xf32>
    %65 = arith.negf %64 : vector<8x128xf32>
    %66 = math.exp %65 : vector<8x128xf32>
    %cst_22 = arith.constant 1.000000e+00 : f32
    %67 = vector.broadcast %cst_22 : f32 to vector<8x128xf32>
    %68 = arith.addf %67, %66 : vector<8x128xf32>
    %69 = arith.divf %67, %68 : vector<8x128xf32>
    %70 = vector.extract_strided_slice %51 {offsets = [0, 256], sizes = [8, 128], strides = [1, 1]} : vector<8x384xf32> to vector<8x128xf32>
    %71 = vector.extract_strided_slice %53 {offsets = [0, 256], sizes = [8, 128], strides = [1, 1]} : vector<8x384xf32> to vector<8x128xf32>
    %72 = arith.addf %71, %19 : vector<8x128xf32>
    %73 = arith.mulf %61, %72 : vector<8x128xf32>
    %74 = arith.addf %70, %73 : vector<8x128xf32>
    %75 = math.tanh %74 : vector<8x128xf32>
    %cst_23 = arith.constant 1.000000e+00 : f32
    %76 = vector.broadcast %cst_23 : f32 to vector<8x128xf32>
    %77 = arith.subf %76, %69 : vector<8x128xf32>
    %78 = arith.mulf %77, %75 : vector<8x128xf32>
    %79 = arith.mulf %69, %50 : vector<8x128xf32>
    %80 = arith.addf %78, %79 : vector<8x128xf32>
    %81 = vector.extract_strided_slice %15 {offsets = [16, 0], sizes = [8, 384], strides = [1, 1]} : vector<64x384xf32> to vector<8x384xf32>
    %82 = arith.truncf %80 : vector<8x128xf32> to vector<8x128xbf16>
    %cst_24 = arith.constant dense<0.000000e+00> : vector<8x384xf32>
    %83 = tpu.matmul %82, %16, %cst_24 {dimension_numbers = #tpu.dot_dimension_numbers<[1], [0], [0], [1], [0, 0, 1, 1], [], []>} : vector<8x128xbf16>, vector<128x384xbf16>, vector<8x384xf32> -> vector<8x384xf32>
    %84 = vector.extract_strided_slice %81 {offsets = [0, 0], sizes = [8, 128], strides = [1, 1]} : vector<8x384xf32> to vector<8x128xf32>
    %85 = vector.extract_strided_slice %83 {offsets = [0, 0], sizes = [8, 128], strides = [1, 1]} : vector<8x384xf32> to vector<8x128xf32>
    %86 = arith.addf %84, %85 : vector<8x128xf32>
    %87 = arith.negf %86 : vector<8x128xf32>
    %88 = math.exp %87 : vector<8x128xf32>
    %cst_25 = arith.constant 1.000000e+00 : f32
    %89 = vector.broadcast %cst_25 : f32 to vector<8x128xf32>
    %90 = arith.addf %89, %88 : vector<8x128xf32>
    %91 = arith.divf %89, %90 : vector<8x128xf32>
    %92 = vector.extract_strided_slice %81 {offsets = [0, 128], sizes = [8, 128], strides = [1, 1]} : vector<8x384xf32> to vector<8x128xf32>
    %93 = vector.extract_strided_slice %83 {offsets = [0, 128], sizes = [8, 128], strides = [1, 1]} : vector<8x384xf32> to vector<8x128xf32>
    %94 = arith.addf %92, %93 : vector<8x128xf32>
    %95 = arith.negf %94 : vector<8x128xf32>
    %96 = math.exp %95 : vector<8x128xf32>
    %cst_26 = arith.constant 1.000000e+00 : f32
    %97 = vector.broadcast %cst_26 : f32 to vector<8x128xf32>
    %98 = arith.addf %97, %96 : vector<8x128xf32>
    %99 = arith.divf %97, %98 : vector<8x128xf32>
    %100 = vector.extract_strided_slice %81 {offsets = [0, 256], sizes = [8, 128], strides = [1, 1]} : vector<8x384xf32> to vector<8x128xf32>
    %101 = vector.extract_strided_slice %83 {offsets = [0, 256], sizes = [8, 128], strides = [1, 1]} : vector<8x384xf32> to vector<8x128xf32>
    %102 = arith.addf %101, %19 : vector<8x128xf32>
    %103 = arith.mulf %91, %102 : vector<8x128xf32>
    %104 = arith.addf %100, %103 : vector<8x128xf32>
    %105 = math.tanh %104 : vector<8x128xf32>
    %cst_27 = arith.constant 1.000000e+00 : f32
    %106 = vector.broadcast %cst_27 : f32 to vector<8x128xf32>
    %107 = arith.subf %106, %99 : vector<8x128xf32>
    %108 = arith.mulf %107, %105 : vector<8x128xf32>
    %109 = arith.mulf %99, %80 : vector<8x128xf32>
    %110 = arith.addf %108, %109 : vector<8x128xf32>
    %111 = vector.extract_strided_slice %15 {offsets = [24, 0], sizes = [8, 384], strides = [1, 1]} : vector<64x384xf32> to vector<8x384xf32>
    %112 = arith.truncf %110 : vector<8x128xf32> to vector<8x128xbf16>
    %cst_28 = arith.constant dense<0.000000e+00> : vector<8x384xf32>
    %113 = tpu.matmul %112, %16, %cst_28 {dimension_numbers = #tpu.dot_dimension_numbers<[1], [0], [0], [1], [0, 0, 1, 1], [], []>} : vector<8x128xbf16>, vector<128x384xbf16>, vector<8x384xf32> -> vector<8x384xf32>
    %114 = vector.extract_strided_slice %111 {offsets = [0, 0], sizes = [8, 128], strides = [1, 1]} : vector<8x384xf32> to vector<8x128xf32>
    %115 = vector.extract_strided_slice %113 {offsets = [0, 0], sizes = [8, 128], strides = [1, 1]} : vector<8x384xf32> to vector<8x128xf32>
    %116 = arith.addf %114, %115 : vector<8x128xf32>
    %117 = arith.negf %116 : vector<8x128xf32>
    %118 = math.exp %117 : vector<8x128xf32>
    %cst_29 = arith.constant 1.000000e+00 : f32
    %119 = vector.broadcast %cst_29 : f32 to vector<8x128xf32>
    %120 = arith.addf %119, %118 : vector<8x128xf32>
    %121 = arith.divf %119, %120 : vector<8x128xf32>
    %122 = vector.extract_strided_slice %111 {offsets = [0, 128], sizes = [8, 128], strides = [1, 1]} : vector<8x384xf32> to vector<8x128xf32>
    %123 = vector.extract_strided_slice %113 {offsets = [0, 128], sizes = [8, 128], strides = [1, 1]} : vector<8x384xf32> to vector<8x128xf32>
    %124 = arith.addf %122, %123 : vector<8x128xf32>
    %125 = arith.negf %124 : vector<8x128xf32>
    %126 = math.exp %125 : vector<8x128xf32>
    %cst_30 = arith.constant 1.000000e+00 : f32
    %127 = vector.broadcast %cst_30 : f32 to vector<8x128xf32>
    %128 = arith.addf %127, %126 : vector<8x128xf32>
    %129 = arith.divf %127, %128 : vector<8x128xf32>
    %130 = vector.extract_strided_slice %111 {offsets = [0, 256], sizes = [8, 128], strides = [1, 1]} : vector<8x384xf32> to vector<8x128xf32>
    %131 = vector.extract_strided_slice %113 {offsets = [0, 256], sizes = [8, 128], strides = [1, 1]} : vector<8x384xf32> to vector<8x128xf32>
    %132 = arith.addf %131, %19 : vector<8x128xf32>
    %133 = arith.mulf %121, %132 : vector<8x128xf32>
    %134 = arith.addf %130, %133 : vector<8x128xf32>
    %135 = math.tanh %134 : vector<8x128xf32>
    %cst_31 = arith.constant 1.000000e+00 : f32
    %136 = vector.broadcast %cst_31 : f32 to vector<8x128xf32>
    %137 = arith.subf %136, %129 : vector<8x128xf32>
    %138 = arith.mulf %137, %135 : vector<8x128xf32>
    %139 = arith.mulf %129, %110 : vector<8x128xf32>
    %140 = arith.addf %138, %139 : vector<8x128xf32>
    %141 = vector.extract_strided_slice %15 {offsets = [32, 0], sizes = [8, 384], strides = [1, 1]} : vector<64x384xf32> to vector<8x384xf32>
    %142 = arith.truncf %140 : vector<8x128xf32> to vector<8x128xbf16>
    %cst_32 = arith.constant dense<0.000000e+00> : vector<8x384xf32>
    %143 = tpu.matmul %142, %16, %cst_32 {dimension_numbers = #tpu.dot_dimension_numbers<[1], [0], [0], [1], [0, 0, 1, 1], [], []>} : vector<8x128xbf16>, vector<128x384xbf16>, vector<8x384xf32> -> vector<8x384xf32>
    %144 = vector.extract_strided_slice %141 {offsets = [0, 0], sizes = [8, 128], strides = [1, 1]} : vector<8x384xf32> to vector<8x128xf32>
    %145 = vector.extract_strided_slice %143 {offsets = [0, 0], sizes = [8, 128], strides = [1, 1]} : vector<8x384xf32> to vector<8x128xf32>
    %146 = arith.addf %144, %145 : vector<8x128xf32>
    %147 = arith.negf %146 : vector<8x128xf32>
    %148 = math.exp %147 : vector<8x128xf32>
    %cst_33 = arith.constant 1.000000e+00 : f32
    %149 = vector.broadcast %cst_33 : f32 to vector<8x128xf32>
    %150 = arith.addf %149, %148 : vector<8x128xf32>
    %151 = arith.divf %149, %150 : vector<8x128xf32>
    %152 = vector.extract_strided_slice %141 {offsets = [0, 128], sizes = [8, 128], strides = [1, 1]} : vector<8x384xf32> to vector<8x128xf32>
    %153 = vector.extract_strided_slice %143 {offsets = [0, 128], sizes = [8, 128], strides = [1, 1]} : vector<8x384xf32> to vector<8x128xf32>
    %154 = arith.addf %152, %153 : vector<8x128xf32>
    %155 = arith.negf %154 : vector<8x128xf32>
    %156 = math.exp %155 : vector<8x128xf32>
    %cst_34 = arith.constant 1.000000e+00 : f32
    %157 = vector.broadcast %cst_34 : f32 to vector<8x128xf32>
    %158 = arith.addf %157, %156 : vector<8x128xf32>
    %159 = arith.divf %157, %158 : vector<8x128xf32>
    %160 = vector.extract_strided_slice %141 {offsets = [0, 256], sizes = [8, 128], strides = [1, 1]} : vector<8x384xf32> to vector<8x128xf32>
    %161 = vector.extract_strided_slice %143 {offsets = [0, 256], sizes = [8, 128], strides = [1, 1]} : vector<8x384xf32> to vector<8x128xf32>
    %162 = arith.addf %161, %19 : vector<8x128xf32>
    %163 = arith.mulf %151, %162 : vector<8x128xf32>
    %164 = arith.addf %160, %163 : vector<8x128xf32>
    %165 = math.tanh %164 : vector<8x128xf32>
    %cst_35 = arith.constant 1.000000e+00 : f32
    %166 = vector.broadcast %cst_35 : f32 to vector<8x128xf32>
    %167 = arith.subf %166, %159 : vector<8x128xf32>
    %168 = arith.mulf %167, %165 : vector<8x128xf32>
    %169 = arith.mulf %159, %140 : vector<8x128xf32>
    %170 = arith.addf %168, %169 : vector<8x128xf32>
    %171 = vector.extract_strided_slice %15 {offsets = [40, 0], sizes = [8, 384], strides = [1, 1]} : vector<64x384xf32> to vector<8x384xf32>
    %172 = arith.truncf %170 : vector<8x128xf32> to vector<8x128xbf16>
    %cst_36 = arith.constant dense<0.000000e+00> : vector<8x384xf32>
    %173 = tpu.matmul %172, %16, %cst_36 {dimension_numbers = #tpu.dot_dimension_numbers<[1], [0], [0], [1], [0, 0, 1, 1], [], []>} : vector<8x128xbf16>, vector<128x384xbf16>, vector<8x384xf32> -> vector<8x384xf32>
    %174 = vector.extract_strided_slice %171 {offsets = [0, 0], sizes = [8, 128], strides = [1, 1]} : vector<8x384xf32> to vector<8x128xf32>
    %175 = vector.extract_strided_slice %173 {offsets = [0, 0], sizes = [8, 128], strides = [1, 1]} : vector<8x384xf32> to vector<8x128xf32>
    %176 = arith.addf %174, %175 : vector<8x128xf32>
    %177 = arith.negf %176 : vector<8x128xf32>
    %178 = math.exp %177 : vector<8x128xf32>
    %cst_37 = arith.constant 1.000000e+00 : f32
    %179 = vector.broadcast %cst_37 : f32 to vector<8x128xf32>
    %180 = arith.addf %179, %178 : vector<8x128xf32>
    %181 = arith.divf %179, %180 : vector<8x128xf32>
    %182 = vector.extract_strided_slice %171 {offsets = [0, 128], sizes = [8, 128], strides = [1, 1]} : vector<8x384xf32> to vector<8x128xf32>
    %183 = vector.extract_strided_slice %173 {offsets = [0, 128], sizes = [8, 128], strides = [1, 1]} : vector<8x384xf32> to vector<8x128xf32>
    %184 = arith.addf %182, %183 : vector<8x128xf32>
    %185 = arith.negf %184 : vector<8x128xf32>
    %186 = math.exp %185 : vector<8x128xf32>
    %cst_38 = arith.constant 1.000000e+00 : f32
    %187 = vector.broadcast %cst_38 : f32 to vector<8x128xf32>
    %188 = arith.addf %187, %186 : vector<8x128xf32>
    %189 = arith.divf %187, %188 : vector<8x128xf32>
    %190 = vector.extract_strided_slice %171 {offsets = [0, 256], sizes = [8, 128], strides = [1, 1]} : vector<8x384xf32> to vector<8x128xf32>
    %191 = vector.extract_strided_slice %173 {offsets = [0, 256], sizes = [8, 128], strides = [1, 1]} : vector<8x384xf32> to vector<8x128xf32>
    %192 = arith.addf %191, %19 : vector<8x128xf32>
    %193 = arith.mulf %181, %192 : vector<8x128xf32>
    %194 = arith.addf %190, %193 : vector<8x128xf32>
    %195 = math.tanh %194 : vector<8x128xf32>
    %cst_39 = arith.constant 1.000000e+00 : f32
    %196 = vector.broadcast %cst_39 : f32 to vector<8x128xf32>
    %197 = arith.subf %196, %189 : vector<8x128xf32>
    %198 = arith.mulf %197, %195 : vector<8x128xf32>
    %199 = arith.mulf %189, %170 : vector<8x128xf32>
    %200 = arith.addf %198, %199 : vector<8x128xf32>
    %201 = vector.extract_strided_slice %15 {offsets = [48, 0], sizes = [8, 384], strides = [1, 1]} : vector<64x384xf32> to vector<8x384xf32>
    %202 = arith.truncf %200 : vector<8x128xf32> to vector<8x128xbf16>
    %cst_40 = arith.constant dense<0.000000e+00> : vector<8x384xf32>
    %203 = tpu.matmul %202, %16, %cst_40 {dimension_numbers = #tpu.dot_dimension_numbers<[1], [0], [0], [1], [0, 0, 1, 1], [], []>} : vector<8x128xbf16>, vector<128x384xbf16>, vector<8x384xf32> -> vector<8x384xf32>
    %204 = vector.extract_strided_slice %201 {offsets = [0, 0], sizes = [8, 128], strides = [1, 1]} : vector<8x384xf32> to vector<8x128xf32>
    %205 = vector.extract_strided_slice %203 {offsets = [0, 0], sizes = [8, 128], strides = [1, 1]} : vector<8x384xf32> to vector<8x128xf32>
    %206 = arith.addf %204, %205 : vector<8x128xf32>
    %207 = arith.negf %206 : vector<8x128xf32>
    %208 = math.exp %207 : vector<8x128xf32>
    %cst_41 = arith.constant 1.000000e+00 : f32
    %209 = vector.broadcast %cst_41 : f32 to vector<8x128xf32>
    %210 = arith.addf %209, %208 : vector<8x128xf32>
    %211 = arith.divf %209, %210 : vector<8x128xf32>
    %212 = vector.extract_strided_slice %201 {offsets = [0, 128], sizes = [8, 128], strides = [1, 1]} : vector<8x384xf32> to vector<8x128xf32>
    %213 = vector.extract_strided_slice %203 {offsets = [0, 128], sizes = [8, 128], strides = [1, 1]} : vector<8x384xf32> to vector<8x128xf32>
    %214 = arith.addf %212, %213 : vector<8x128xf32>
    %215 = arith.negf %214 : vector<8x128xf32>
    %216 = math.exp %215 : vector<8x128xf32>
    %cst_42 = arith.constant 1.000000e+00 : f32
    %217 = vector.broadcast %cst_42 : f32 to vector<8x128xf32>
    %218 = arith.addf %217, %216 : vector<8x128xf32>
    %219 = arith.divf %217, %218 : vector<8x128xf32>
    %220 = vector.extract_strided_slice %201 {offsets = [0, 256], sizes = [8, 128], strides = [1, 1]} : vector<8x384xf32> to vector<8x128xf32>
    %221 = vector.extract_strided_slice %203 {offsets = [0, 256], sizes = [8, 128], strides = [1, 1]} : vector<8x384xf32> to vector<8x128xf32>
    %222 = arith.addf %221, %19 : vector<8x128xf32>
    %223 = arith.mulf %211, %222 : vector<8x128xf32>
    %224 = arith.addf %220, %223 : vector<8x128xf32>
    %225 = math.tanh %224 : vector<8x128xf32>
    %cst_43 = arith.constant 1.000000e+00 : f32
    %226 = vector.broadcast %cst_43 : f32 to vector<8x128xf32>
    %227 = arith.subf %226, %219 : vector<8x128xf32>
    %228 = arith.mulf %227, %225 : vector<8x128xf32>
    %229 = arith.mulf %219, %200 : vector<8x128xf32>
    %230 = arith.addf %228, %229 : vector<8x128xf32>
    %231 = vector.extract_strided_slice %15 {offsets = [56, 0], sizes = [8, 384], strides = [1, 1]} : vector<64x384xf32> to vector<8x384xf32>
    %232 = arith.truncf %230 : vector<8x128xf32> to vector<8x128xbf16>
    %cst_44 = arith.constant dense<0.000000e+00> : vector<8x384xf32>
    %233 = tpu.matmul %232, %16, %cst_44 {dimension_numbers = #tpu.dot_dimension_numbers<[1], [0], [0], [1], [0, 0, 1, 1], [], []>} : vector<8x128xbf16>, vector<128x384xbf16>, vector<8x384xf32> -> vector<8x384xf32>
    %234 = vector.extract_strided_slice %231 {offsets = [0, 0], sizes = [8, 128], strides = [1, 1]} : vector<8x384xf32> to vector<8x128xf32>
    %235 = vector.extract_strided_slice %233 {offsets = [0, 0], sizes = [8, 128], strides = [1, 1]} : vector<8x384xf32> to vector<8x128xf32>
    %236 = arith.addf %234, %235 : vector<8x128xf32>
    %237 = arith.negf %236 : vector<8x128xf32>
    %238 = math.exp %237 : vector<8x128xf32>
    %cst_45 = arith.constant 1.000000e+00 : f32
    %239 = vector.broadcast %cst_45 : f32 to vector<8x128xf32>
    %240 = arith.addf %239, %238 : vector<8x128xf32>
    %241 = arith.divf %239, %240 : vector<8x128xf32>
    %242 = vector.extract_strided_slice %231 {offsets = [0, 128], sizes = [8, 128], strides = [1, 1]} : vector<8x384xf32> to vector<8x128xf32>
    %243 = vector.extract_strided_slice %233 {offsets = [0, 128], sizes = [8, 128], strides = [1, 1]} : vector<8x384xf32> to vector<8x128xf32>
    %244 = arith.addf %242, %243 : vector<8x128xf32>
    %245 = arith.negf %244 : vector<8x128xf32>
    %246 = math.exp %245 : vector<8x128xf32>
    %cst_46 = arith.constant 1.000000e+00 : f32
    %247 = vector.broadcast %cst_46 : f32 to vector<8x128xf32>
    %248 = arith.addf %247, %246 : vector<8x128xf32>
    %249 = arith.divf %247, %248 : vector<8x128xf32>
    %250 = vector.extract_strided_slice %231 {offsets = [0, 256], sizes = [8, 128], strides = [1, 1]} : vector<8x384xf32> to vector<8x128xf32>
    %251 = vector.extract_strided_slice %233 {offsets = [0, 256], sizes = [8, 128], strides = [1, 1]} : vector<8x384xf32> to vector<8x128xf32>
    %252 = arith.addf %251, %19 : vector<8x128xf32>
    %253 = arith.mulf %241, %252 : vector<8x128xf32>
    %254 = arith.addf %250, %253 : vector<8x128xf32>
    %255 = math.tanh %254 : vector<8x128xf32>
    %cst_47 = arith.constant 1.000000e+00 : f32
    %256 = vector.broadcast %cst_47 : f32 to vector<8x128xf32>
    %257 = arith.subf %256, %249 : vector<8x128xf32>
    %258 = arith.mulf %257, %255 : vector<8x128xf32>
    %259 = arith.mulf %249, %230 : vector<8x128xf32>
    %260 = arith.addf %258, %259 : vector<8x128xf32>
    %c0_48 = arith.constant 0 : index
    %c0_49 = arith.constant 0 : index
    %261 = vector.load %arg8[%c0_48, %c0_49] : memref<128x128xbf16, #tpu.memory_space<vmem>>, vector<128x128xbf16>
    %c0_50 = arith.constant 0 : index
    %c0_51 = arith.constant 0 : index
    %262 = vector.load %arg9[%c0_50, %c0_51] : memref<1x128xf32, #tpu.memory_space<vmem>>, vector<1x128xf32>
    %263 = arith.truncf %260 : vector<8x128xf32> to vector<8x128xbf16>
    %cst_52 = arith.constant dense<0.000000e+00> : vector<8x128xf32>
    %264 = tpu.matmul %263, %261, %cst_52 {dimension_numbers = #tpu.dot_dimension_numbers<[1], [0], [0], [1], [0, 0, 1, 1], [], []>} : vector<8x128xbf16>, vector<128x128xbf16>, vector<8x128xf32> -> vector<8x128xf32>
    %265 = vector.broadcast %262 : vector<1x128xf32> to vector<8x128xf32>
    %266 = arith.addf %264, %265 : vector<8x128xf32>
    %cst_53 = arith.constant 0.000000e+00 : f32
    %267 = vector.broadcast %cst_53 : f32 to vector<8x128xf32>
    %268 = arith.maximumf %266, %267 : vector<8x128xf32>
    %c0_54 = arith.constant 0 : index
    %c0_55 = arith.constant 0 : index
    %269 = vector.load %arg10[%c0_54, %c0_55] : memref<128x128xbf16, #tpu.memory_space<vmem>>, vector<128x128xbf16>
    %c0_56 = arith.constant 0 : index
    %c0_57 = arith.constant 0 : index
    %270 = vector.load %arg11[%c0_56, %c0_57] : memref<1x128xf32, #tpu.memory_space<vmem>>, vector<1x128xf32>
    %271 = arith.truncf %268 : vector<8x128xf32> to vector<8x128xbf16>
    %cst_58 = arith.constant dense<0.000000e+00> : vector<8x128xf32>
    %272 = tpu.matmul %271, %269, %cst_58 {dimension_numbers = #tpu.dot_dimension_numbers<[1], [0], [0], [1], [0, 0, 1, 1], [], []>} : vector<8x128xbf16>, vector<128x128xbf16>, vector<8x128xf32> -> vector<8x128xf32>
    %273 = vector.broadcast %270 : vector<1x128xf32> to vector<8x128xf32>
    %274 = arith.addf %272, %273 : vector<8x128xf32>
    %cst_59 = arith.constant 0.000000e+00 : f32
    %275 = vector.broadcast %cst_59 : f32 to vector<8x128xf32>
    %276 = arith.maximumf %274, %275 : vector<8x128xf32>
    %c0_60 = arith.constant 0 : index
    %c0_61 = arith.constant 0 : index
    %277 = vector.load %arg12[%c0_60, %c0_61] : memref<128x128xbf16, #tpu.memory_space<vmem>>, vector<128x128xbf16>
    %c0_62 = arith.constant 0 : index
    %c0_63 = arith.constant 0 : index
    %278 = vector.load %arg13[%c0_62, %c0_63] : memref<1x128xf32, #tpu.memory_space<vmem>>, vector<1x128xf32>
    %279 = arith.truncf %276 : vector<8x128xf32> to vector<8x128xbf16>
    %cst_64 = arith.constant dense<0.000000e+00> : vector<8x128xf32>
    %280 = tpu.matmul %279, %277, %cst_64 {dimension_numbers = #tpu.dot_dimension_numbers<[1], [0], [0], [1], [0, 0, 1, 1], [], []>} : vector<8x128xbf16>, vector<128x128xbf16>, vector<8x128xf32> -> vector<8x128xf32>
    %281 = vector.broadcast %278 : vector<1x128xf32> to vector<8x128xf32>
    %282 = arith.addf %280, %281 : vector<8x128xf32>
    %cst_65 = arith.constant 0.000000e+00 : f32
    %283 = vector.broadcast %cst_65 : f32 to vector<8x128xf32>
    %284 = arith.maximumf %282, %283 : vector<8x128xf32>
    %c0_66 = arith.constant 0 : index
    %c0_67 = arith.constant 0 : index
    %285 = vector.load %arg14[%c0_66, %c0_67] : memref<128x128xbf16, #tpu.memory_space<vmem>>, vector<128x128xbf16>
    %c0_68 = arith.constant 0 : index
    %c0_69 = arith.constant 0 : index
    %286 = vector.load %arg15[%c0_68, %c0_69] : memref<1x128xf32, #tpu.memory_space<vmem>>, vector<1x128xf32>
    %287 = arith.truncf %284 : vector<8x128xf32> to vector<8x128xbf16>
    %cst_70 = arith.constant dense<0.000000e+00> : vector<8x128xf32>
    %288 = tpu.matmul %287, %285, %cst_70 {dimension_numbers = #tpu.dot_dimension_numbers<[1], [0], [0], [1], [0, 0, 1, 1], [], []>} : vector<8x128xbf16>, vector<128x128xbf16>, vector<8x128xf32> -> vector<8x128xf32>
    %289 = vector.broadcast %286 : vector<1x128xf32> to vector<8x128xf32>
    %290 = arith.addf %288, %289 : vector<8x128xf32>
    %cst_71 = arith.constant 0.000000e+00 : f32
    %291 = vector.broadcast %cst_71 : f32 to vector<8x128xf32>
    %292 = arith.maximumf %290, %291 : vector<8x128xf32>
    %c0_72 = arith.constant 0 : index
    %c0_73 = arith.constant 0 : index
    %293 = vector.load %arg16[%c0_72, %c0_73] : memref<128x128xbf16, #tpu.memory_space<vmem>>, vector<128x128xbf16>
    %c0_74 = arith.constant 0 : index
    %c0_75 = arith.constant 0 : index
    %294 = vector.load %arg17[%c0_74, %c0_75] : memref<1x128xf32, #tpu.memory_space<vmem>>, vector<1x128xf32>
    %295 = arith.truncf %292 : vector<8x128xf32> to vector<8x128xbf16>
    %cst_76 = arith.constant dense<0.000000e+00> : vector<8x128xf32>
    %296 = tpu.matmul %295, %293, %cst_76 {dimension_numbers = #tpu.dot_dimension_numbers<[1], [0], [0], [1], [0, 0, 1, 1], [], []>} : vector<8x128xbf16>, vector<128x128xbf16>, vector<8x128xf32> -> vector<8x128xf32>
    %297 = vector.broadcast %294 : vector<1x128xf32> to vector<8x128xf32>
    %298 = arith.addf %296, %297 : vector<8x128xf32>
    %c0_77 = arith.constant 0 : index
    %c0_78 = arith.constant 0 : index
    %299 = vector.load %arg18[%c0_77, %c0_78] : memref<8x128xf32, #tpu.memory_space<vmem>>, vector<8x128xf32>
    tpu.vector_store %arg18[%c0_77, %c0_78], %298 {strides = array<i32>} : memref<8x128xf32, #tpu.memory_space<vmem>>, vector<8x128xf32>,
    return
  }
  func.func @transform_0(%arg0: i32) -> (i32, i32) {
    %c0_i32 = arith.constant 0 : i32
    %c0_i32_0 = arith.constant 0 : i32
    %c0_i32_1 = arith.constant 0 : i32
    return %c0_i32, %c0_i32_0 : i32, i32
  }
  func.func @transform_1(%arg0: i32) -> (i32, i32) {
    %c0_i32 = arith.constant 0 : i32
    %c0_i32_0 = arith.constant 0 : i32
    %c0_i32_1 = arith.constant 0 : i32
    return %c0_i32, %c0_i32_0 : i32, i32
  }
  func.func @transform_2(%arg0: i32) -> (i32, i32) {
    %c0_i32 = arith.constant 0 : i32
    %c0_i32_0 = arith.constant 0 : i32
    %c0_i32_1 = arith.constant 0 : i32
    return %c0_i32, %c0_i32_0 : i32, i32
  }
  func.func @transform_3(%arg0: i32) -> (i32, i32) {
    %c0_i32 = arith.constant 0 : i32
    %c0_i32_0 = arith.constant 0 : i32
    %c0_i32_1 = arith.constant 0 : i32
    return %c0_i32, %c0_i32_0 : i32, i32
  }
  func.func @transform_4(%arg0: i32) -> (i32, i32) {
    %c0_i32 = arith.constant 0 : i32
    %c0_i32_0 = arith.constant 0 : i32
    %c0_i32_1 = arith.constant 0 : i32
    return %c0_i32, %c0_i32_0 : i32, i32
  }
  func.func @transform_5(%arg0: i32) -> (i32, i32) {
    %c0_i32 = arith.constant 0 : i32
    %c0_i32_0 = arith.constant 0 : i32
    %c0_i32_1 = arith.constant 0 : i32
    return %c0_i32, %c0_i32_0 : i32, i32
  }
  func.func @transform_6(%arg0: i32) -> (i32, i32) {
    %c0_i32 = arith.constant 0 : i32
    %c0_i32_0 = arith.constant 0 : i32
    %c0_i32_1 = arith.constant 0 : i32
    return %c0_i32, %c0_i32_0 : i32, i32
  }
  func.func @transform_7(%arg0: i32) -> (i32, i32) {
    %c0_i32 = arith.constant 0 : i32
    %c0_i32_0 = arith.constant 0 : i32
    %c0_i32_1 = arith.constant 0 : i32
    return %c0_i32, %c0_i32_0 : i32, i32
  }
  func.func @transform_8(%arg0: i32) -> (i32, i32) {
    %c0_i32 = arith.constant 0 : i32
    %c0_i32_0 = arith.constant 0 : i32
    %c0_i32_1 = arith.constant 0 : i32
    return %c0_i32, %c0_i32_0 : i32, i32
  }
  func.func @transform_9(%arg0: i32) -> (i32, i32) {
    %c0_i32 = arith.constant 0 : i32
    %c0_i32_0 = arith.constant 0 : i32
    %c0_i32_1 = arith.constant 0 : i32
    return %c0_i32, %c0_i32_0 : i32, i32
  }
  func.func @transform_10(%arg0: i32) -> (i32, i32) {
    %c0_i32 = arith.constant 0 : i32
    %c0_i32_0 = arith.constant 0 : i32
    %c0_i32_1 = arith.constant 0 : i32
    return %c0_i32, %c0_i32_0 : i32, i32
  }
  func.func @transform_11(%arg0: i32) -> (i32, i32) {
    %c0_i32 = arith.constant 0 : i32
    %c0_i32_0 = arith.constant 0 : i32
    %c0_i32_1 = arith.constant 0 : i32
    return %c0_i32, %c0_i32_0 : i32, i32
  }
  func.func @transform_12(%arg0: i32) -> (i32, i32) {
    %c0_i32 = arith.constant 0 : i32
    %c0_i32_0 = arith.constant 0 : i32
    %c0_i32_1 = arith.constant 0 : i32
    return %c0_i32, %c0_i32_0 : i32, i32
  }
  func.func @transform_13(%arg0: i32) -> (i32, i32) {
    %c0_i32 = arith.constant 0 : i32
    %c0_i32_0 = arith.constant 0 : i32
    %c0_i32_1 = arith.constant 0 : i32
    return %c0_i32, %c0_i32_0 : i32, i32
  }
  func.func @transform_14(%arg0: i32) -> (i32, i32) {
    %c0_i32 = arith.constant 0 : i32
    %c0_i32_0 = arith.constant 0 : i32
    %c0_i32_1 = arith.constant 0 : i32
    return %c0_i32, %c0_i32_0 : i32, i32
  }
  func.func @transform_15(%arg0: i32) -> (i32, i32) {
    %c0_i32 = arith.constant 0 : i32
    %c0_i32_0 = arith.constant 0 : i32
    %c0_i32_1 = arith.constant 0 : i32
    return %c0_i32, %c0_i32_0 : i32, i32
  }
  func.func @transform_16(%arg0: i32) -> (i32, i32) {
    %c0_i32 = arith.constant 0 : i32
    %c0_i32_0 = arith.constant 0 : i32
    %c0_i32_1 = arith.constant 0 : i32
    return %c0_i32, %c0_i32_0 : i32, i32
  }
  func.func @transform_17(%arg0: i32) -> (i32, i32) {
    %c0_i32 = arith.constant 0 : i32
    %c0_i32_0 = arith.constant 0 : i32
    %c0_i32_1 = arith.constant 0 : i32
    return %c0_i32, %c0_i32_0 : i32, i32
  }
}

</mosaic_0001>

<llo_original>
// kernel: tpu_custom_call.1
$region0: #{tpu_custom_call.1}
  #allocation0 [shape = 'u32[]', space=smem, size = 0x4, offset = 0x4, fixed_abs, tag = 'smem constant byte address 0x4 - core index']
  #allocation1 [shape = 'u32[144,128]{1,0:T(1,128)}', space=vmem, size = 0x12000, scoped, tag = 'internal scratch']
  %s0 = inlined_call_operand.hbm [shape: f32[64,128], index: 0, kind: input, shape index: {}]
  %s1 = inlined_call_operand.hbm [shape: bf16[128,128], index: 1, kind: input, shape index: {}]
  %s2 = inlined_call_operand.vmem [shape: f32[1,128], index: 2, kind: input, shape index: {}]
  %s3 = inlined_call_operand.hbm [shape: bf16[128,384], index: 3, kind: input, shape index: {}]
  %s4 = inlined_call_operand.hbm [shape: bf16[128,384], index: 4, kind: input, shape index: {}]
  %s5 = inlined_call_operand.vmem [shape: f32[1,384], index: 5, kind: input, shape index: {}]
  %s6 = inlined_call_operand.vmem [shape: f32[1,128], index: 6, kind: input, shape index: {}]
  %s7 = inlined_call_operand.hbm [shape: bf16[128,128], index: 7, kind: input, shape index: {}]
  %s8 = inlined_call_operand.vmem [shape: f32[1,128], index: 8, kind: input, shape index: {}]
  %s9 = inlined_call_operand.hbm [shape: bf16[128,128], index: 9, kind: input, shape index: {}]
  %s10 = inlined_call_operand.vmem [shape: f32[1,128], index: 10, kind: input, shape index: {}]
  %s11 = inlined_call_operand.hbm [shape: bf16[128,128], index: 11, kind: input, shape index: {}]
  %s12 = inlined_call_operand.vmem [shape: f32[1,128], index: 12, kind: input, shape index: {}]
  %s13 = inlined_call_operand.hbm [shape: bf16[128,128], index: 13, kind: input, shape index: {}]
  %s14 = inlined_call_operand.vmem [shape: f32[1,128], index: 14, kind: input, shape index: {}]
  %s15 = inlined_call_operand.hbm [shape: bf16[128,128], index: 15, kind: input, shape index: {}]
  %s16 = inlined_call_operand.vmem [shape: f32[1,128], index: 16, kind: input, shape index: {}]
  %s17 = inlined_call_operand.hbm [shape: f32[8,128], index: 17, kind: output, shape index: {}]
  %s18 = sld [smem:[#allocation0]]
  $region114: #{tpu_custom_call.1} parent=0
    _
  %s20 = ssub.s32 1, %s18
  %s21 = scalar_select 0, %s20, %s18
  $region1: #{tpu_custom_call.1} parent=0
    #allocation2 [shape = 'u8[32768]{0}', space=vmem, size = 0x8000, scoped, tag = 'input window, operand 0, single buffered']
    #allocation3 [shape = 's32[1]{0}', space=sflag, size = 0x4, scoped, tag = 'scoped memory for tpu_custom_call.1']
    #allocation4 [shape = 's32[1]{0}', space=sflag, size = 0x4, scoped, tag = 'scoped memory for tpu_custom_call.1']
    #allocation5 [shape = 'u8[32768]{0}', space=vmem, size = 0x8000, scoped, tag = 'input window, operand 1, single buffered']
    #allocation6 [shape = 's32[1]{0}', space=sflag, size = 0x4, scoped, tag = 'scoped memory for tpu_custom_call.1']
    #allocation7 [shape = 'u8[98304]{0}', space=vmem, size = 0x18000, scoped, tag = 'input window, operand 3, single buffered']
    #allocation8 [shape = 'u8[98304]{0}', space=vmem, size = 0x18000, scoped, tag = 'input window, operand 4, single buffered']
    #allocation9 [shape = 's32[1]{0}', space=sflag, size = 0x4, scoped, tag = 'scoped memory for tpu_custom_call.1']
    #allocation10 [shape = 'u8[32768]{0}', space=vmem, size = 0x8000, scoped, tag = 'input window, operand 7, single buffered']
    #allocation11 [shape = 'u8[32768]{0}', space=vmem, size = 0x8000, scoped, tag = 'input window, operand 9, single buffered']
    #allocation12 [shape = 's32[1]{0}', space=sflag, size = 0x4, scoped, tag = 'scoped memory for tpu_custom_call.1']
    #allocation13 [shape = 'u8[32768]{0}', space=vmem, size = 0x8000, scoped, tag = 'input window, operand 11, single buffered']
    #allocation14 [shape = 'u8[32768]{0}', space=vmem, size = 0x8000, scoped, tag = 'input window, operand 13, single buffered']
    #allocation15 [shape = 's32[1]{0}', space=sflag, size = 0x4, scoped, tag = 'scoped memory for tpu_custom_call.1']
    #allocation16 [shape = 'u8[32768]{0}', space=vmem, size = 0x8000, scoped, tag = 'input window, operand 15, single buffered']
    #allocation17 [shape = 'u8[4096]{0}', space=vmem, size = 0x1000, scoped, tag = 'output window, operand 0, single buffered']
    %22 = vsyncpa [#allocation3], 0
    %23 = vsyncpa [#allocation6], 0
    %24 = vsyncpa [#allocation9], 0
    %25 = vsyncpa [#allocation12], 0
    %26 = vsyncpa [#allocation15], 0
    %27 = vsyncpa [#allocation4], 0
    // Predicated region
    $region2: #{tpu_custom_call.1} parent=1 // pred_check
      _
    $region3: #{tpu_custom_call.1} parent=1 // pred_check_branch
      %29 = sbr.rel (0) target = $region5
    $region4: #{tpu_custom_call.1} parent=1 // pred_region
      %s31 = ssub.s32 1024, 1024
      %32 = vsyncadd [#allocation3], %s31
      %s33 = sshll.u32 [#allocation2], 4
      %s34 = int_to_ptr.vmem [resolvable:$true] %s33
      %39 = dma.hbm_to_vmem [thread:$0]  %s0, 1024, %s34, [#allocation3], 128, 128, 8
    $region5: #{tpu_custom_call.1} parent=1 // pred_fallthru
      _
    // Predicated region
    $region6: #{tpu_custom_call.1} parent=1 // pred_check
      _
    $region7: #{tpu_custom_call.1} parent=1 // pred_check_branch
      %41 = sbr.rel (0) target = $region9
    $region8: #{tpu_custom_call.1} parent=1 // pred_region
      %s43 = ssub.s32 1024, 1024
      %44 = vsyncadd [#allocation6], %s43
      %s45 = sshll.u32 [#allocation5], 4
      %s46 = int_to_ptr.vmem [resolvable:$true] %s45
      %51 = dma.hbm_to_vmem [thread:$0]  %s1, 1024, %s46, [#allocation6], 64, 64, 4
    $region9: #{tpu_custom_call.1} parent=1 // pred_fallthru
      _
    // Predicated region
    $region10: #{tpu_custom_call.1} parent=1 // pred_check
      _
    $region11: #{tpu_custom_call.1} parent=1 // pred_check_branch
      %53 = sbr.rel (0) target = $region13
    $region12: #{tpu_custom_call.1} parent=1 // pred_region
      _
    $region13: #{tpu_custom_call.1} parent=1 // pred_fallthru
      _
    // Predicated region
    $region14: #{tpu_custom_call.1} parent=1 // pred_check
      _
    $region15: #{tpu_custom_call.1} parent=1 // pred_check_branch
      %55 = sbr.rel (0) target = $region17
    $region16: #{tpu_custom_call.1} parent=1 // pred_region
      %s57 = ssub.s32 3072, 3072
      %58 = vsyncadd [#allocation6], %s57
      %s59 = sshll.u32 [#allocation7], 4
      %s60 = int_to_ptr.vmem [resolvable:$true] %s59
      %65 = dma.hbm_to_vmem [thread:$0]  %s3, 3072, %s60, [#allocation6], 192, 192, 12
    $region17: #{tpu_custom_call.1} parent=1 // pred_fallthru
      _
    // Predicated region
    $region18: #{tpu_custom_call.1} parent=1 // pred_check
      _
    $region19: #{tpu_custom_call.1} parent=1 // pred_check_branch
      %67 = sbr.rel (0) target = $region21
    $region20: #{tpu_custom_call.1} parent=1 // pred_region
      %s69 = ssub.s32 3072, 3072
      %70 = vsyncadd [#allocation9], %s69
      %s71 = sshll.u32 [#allocation8], 4
      %s72 = int_to_ptr.vmem [resolvable:$true] %s71
      %77 = dma.hbm_to_vmem [thread:$0]  %s4, 3072, %s72, [#allocation9], 192, 192, 12
    $region21: #{tpu_custom_call.1} parent=1 // pred_fallthru
      _
    // Predicated region
    $region22: #{tpu_custom_call.1} parent=1 // pred_check
      _
    $region23: #{tpu_custom_call.1} parent=1 // pred_check_branch
      %79 = sbr.rel (0) target = $region25
    $region24: #{tpu_custom_call.1} parent=1 // pred_region
      _
    $region25: #{tpu_custom_call.1} parent=1 // pred_fallthru
      _
    // Predicated region
    $region26: #{tpu_custom_call.1} parent=1 // pred_check
      _
    $region27: #{tpu_custom_call.1} parent=1 // pred_check_branch
      %81 = sbr.rel (0) target = $region29
    $region28: #{tpu_custom_call.1} parent=1 // pred_region
      _
    $region29: #{tpu_custom_call.1} parent=1 // pred_fallthru
      _
    // Predicated region
    $region30: #{tpu_custom_call.1} parent=1 // pred_check
      _
    $region31: #{tpu_custom_call.1} parent=1 // pred_check_branch
      %83 = sbr.rel (0) target = $region33
    $region32: #{tpu_custom_call.1} parent=1 // pred_region
      %s85 = ssub.s32 1024, 1024
      %86 = vsyncadd [#allocation9], %s85
      %s87 = sshll.u32 [#allocation10], 4
      %s88 = int_to_ptr.vmem [resolvable:$true] %s87
      %93 = dma.hbm_to_vmem [thread:$0]  %s7, 1024, %s88, [#allocation9], 64, 64, 4
    $region33: #{tpu_custom_call.1} parent=1 // pred_fallthru
      _
    // Predicated region
    $region34: #{tpu_custom_call.1} parent=1 // pred_check
      _
    $region35: #{tpu_custom_call.1} parent=1 // pred_check_branch
      %95 = sbr.rel (0) target = $region37
    $region36: #{tpu_custom_call.1} parent=1 // pred_region
      _
    $region37: #{tpu_custom_call.1} parent=1 // pred_fallthru
      _
    // Predicated region
    $region38: #{tpu_custom_call.1} parent=1 // pred_check
      _
    $region39: #{tpu_custom_call.1} parent=1 // pred_check_branch
      %97 = sbr.rel (0) target = $region41
    $region40: #{tpu_custom_call.1} parent=1 // pred_region
      %s99 = ssub.s32 1024, 1024
      %100 = vsyncadd [#allocation12], %s99
      %s101 = sshll.u32 [#allocation11], 4
      %s102 = int_to_ptr.vmem [resolvable:$true] %s101
      %107 = dma.hbm_to_vmem [thread:$0]  %s9, 1024, %s102, [#allocation12], 64, 64, 4
    $region41: #{tpu_custom_call.1} parent=1 // pred_fallthru
      _
    // Predicated region
    $region42: #{tpu_custom_call.1} parent=1 // pred_check
      _
    $region43: #{tpu_custom_call.1} parent=1 // pred_check_branch
      %109 = sbr.rel (0) target = $region45
    $region44: #{tpu_custom_call.1} parent=1 // pred_region
      _
    $region45: #{tpu_custom_call.1} parent=1 // pred_fallthru
      _
    // Predicated region
    $region46: #{tpu_custom_call.1} parent=1 // pred_check
      _
    $region47: #{tpu_custom_call.1} parent=1 // pred_check_branch
      %111 = sbr.rel (0) target = $region49
    $region48: #{tpu_custom_call.1} parent=1 // pred_region
      %s113 = ssub.s32 1024, 1024
      %114 = vsyncadd [#allocation12], %s113
      %s115 = sshll.u32 [#allocation13], 4
      %s116 = int_to_ptr.vmem [resolvable:$true] %s115
      %121 = dma.hbm_to_vmem [thread:$0]  %s11, 1024, %s116, [#allocation12], 64, 64, 4
    $region49: #{tpu_custom_call.1} parent=1 // pred_fallthru
      _
    // Predicated region
    $region50: #{tpu_custom_call.1} parent=1 // pred_check
      _
    $region51: #{tpu_custom_call.1} parent=1 // pred_check_branch
      %123 = sbr.rel (0) target = $region53
    $region52: #{tpu_custom_call.1} parent=1 // pred_region
      _
    $region53: #{tpu_custom_call.1} parent=1 // pred_fallthru
      _
    // Predicated region
    $region54: #{tpu_custom_call.1} parent=1 // pred_check
      _
    $region55: #{tpu_custom_call.1} parent=1 // pred_check_branch
      %125 = sbr.rel (0) target = $region57
    $region56: #{tpu_custom_call.1} parent=1 // pred_region
      %s127 = ssub.s32 1024, 1024
      %128 = vsyncadd [#allocation15], %s127
      %s129 = sshll.u32 [#allocation14], 4
      %s130 = int_to_ptr.vmem [resolvable:$true] %s129
      %135 = dma.hbm_to_vmem [thread:$0]  %s13, 1024, %s130, [#allocation15], 64, 64, 4
    $region57: #{tpu_custom_call.1} parent=1 // pred_fallthru
      _
    // Predicated region
    $region58: #{tpu_custom_call.1} parent=1 // pred_check
      _
    $region59: #{tpu_custom_call.1} parent=1 // pred_check_branch
      %137 = sbr.rel (0) target = $region61
    $region60: #{tpu_custom_call.1} parent=1 // pred_region
      _
    $region61: #{tpu_custom_call.1} parent=1 // pred_fallthru
      _
    // Predicated region
    $region62: #{tpu_custom_call.1} parent=1 // pred_check
      _
    $region63: #{tpu_custom_call.1} parent=1 // pred_check_branch
      %139 = sbr.rel (0) target = $region65
    $region64: #{tpu_custom_call.1} parent=1 // pred_region
      %s141 = ssub.s32 1024, 1024
      %142 = vsyncadd [#allocation15], %s141
      %s143 = sshll.u32 [#allocation16], 4
      %s144 = int_to_ptr.vmem [resolvable:$true] %s143
      %149 = dma.hbm_to_vmem [thread:$0]  %s15, 1024, %s144, [#allocation15], 64, 64, 4
    $region65: #{tpu_custom_call.1} parent=1 // pred_fallthru
      _
    // Predicated region
    $region66: #{tpu_custom_call.1} parent=1 // pred_check
      _
    $region67: #{tpu_custom_call.1} parent=1 // pred_check_branch
      %151 = sbr.rel (0) target = $region69
    $region68: #{tpu_custom_call.1} parent=1 // pred_region
      _
    $region69: #{tpu_custom_call.1} parent=1 // pred_fallthru
      _
    // Predicated region
    $region70: #{tpu_custom_call.1} parent=1 // pred_check
      _
    $region71: #{tpu_custom_call.1} parent=1 // pred_check_branch
      %153 = sbr.rel (0) target = $region73
    $region72: #{tpu_custom_call.1} parent=1 // pred_region
      %154 = dma.done [#allocation3], 1024
    $region73: #{tpu_custom_call.1} parent=1 // pred_fallthru
      _
    // Predicated region
    $region74: #{tpu_custom_call.1} parent=1 // pred_check
      _
    $region75: #{tpu_custom_call.1} parent=1 // pred_check_branch
      %156 = sbr.rel (0) target = $region77
    $region76: #{tpu_custom_call.1} parent=1 // pred_region
      %157 = dma.done [#allocation6], 1024
    $region77: #{tpu_custom_call.1} parent=1 // pred_fallthru
      _
    // Predicated region
    $region78: #{tpu_custom_call.1} parent=1 // pred_check
      _
    $region79: #{tpu_custom_call.1} parent=1 // pred_check_branch
      %159 = sbr.rel (0) target = $region81
    $region80: #{tpu_custom_call.1} parent=1 // pred_region
      %160 = dma.done [#allocation6], 3072
    $region81: #{tpu_custom_call.1} parent=1 // pred_fallthru
      _
    // Predicated region
    $region82: #{tpu_custom_call.1} parent=1 // pred_check
      _
    $region83: #{tpu_custom_call.1} parent=1 // pred_check_branch
      %162 = sbr.rel (0) target = $region85
    $region84: #{tpu_custom_call.1} parent=1 // pred_region
      %163 = dma.done [#allocation9], 3072
    $region85: #{tpu_custom_call.1} parent=1 // pred_fallthru
      _
    // Predicated region
    $region86: #{tpu_custom_call.1} parent=1 // pred_check
      _
    $region87: #{tpu_custom_call.1} parent=1 // pred_check_branch
      %165 = sbr.rel (0) target = $region89
    $region88: #{tpu_custom_call.1} parent=1 // pred_region
      %166 = dma.done [#allocation9], 1024
    $region89: #{tpu_custom_call.1} parent=1 // pred_fallthru
      _
    // Predicated region
    $region90: #{tpu_custom_call.1} parent=1 // pred_check
      _
    $region91: #{tpu_custom_call.1} parent=1 // pred_check_branch
      %168 = sbr.rel (0) target = $region93
    $region92: #{tpu_custom_call.1} parent=1 // pred_region
      %169 = dma.done [#allocation12], 1024
    $region93: #{tpu_custom_call.1} parent=1 // pred_fallthru
      _
    // Predicated region
    $region94: #{tpu_custom_call.1} parent=1 // pred_check
      _
    $region95: #{tpu_custom_call.1} parent=1 // pred_check_branch
      %171 = sbr.rel (0) target = $region97
    $region96: #{tpu_custom_call.1} parent=1 // pred_region
      %172 = dma.done [#allocation12], 1024
    $region97: #{tpu_custom_call.1} parent=1 // pred_fallthru
      _
    // Predicated region
    $region98: #{tpu_custom_call.1} parent=1 // pred_check
      _
    $region99: #{tpu_custom_call.1} parent=1 // pred_check_branch
      %174 = sbr.rel (0) target = $region101
    $region100: #{tpu_custom_call.1} parent=1 // pred_region
      %175 = dma.done [#allocation15], 1024
    $region101: #{tpu_custom_call.1} parent=1 // pred_fallthru
      _
    // Predicated region
    $region102: #{tpu_custom_call.1} parent=1 // pred_check
      _
    $region103: #{tpu_custom_call.1} parent=1 // pred_check_branch
      %177 = sbr.rel (0) target = $region105
    $region104: #{tpu_custom_call.1} parent=1 // pred_region
      %178 = dma.done [#allocation15], 1024
    $region105: #{tpu_custom_call.1} parent=1 // pred_fallthru
      _
    %v180 = vld [vmem:[#allocation2] sm:$0xff]
    %v181 = vld [vmem:[#allocation2 + $0x8] sm:$0xff]
    %v182 = vld [vmem:[#allocation2 + $0x10] sm:$0xff]
    %v183 = vld [vmem:[#allocation2 + $0x18] sm:$0xff]
    %v184 = vld [vmem:[#allocation2 + $0x20] sm:$0xff]
    %v185 = vld [vmem:[#allocation2 + $0x28] sm:$0xff]
    %v186 = vld [vmem:[#allocation2 + $0x30] sm:$0xff]
    %v187 = vld [vmem:[#allocation2 + $0x38] sm:$0xff]
    %v188 = vpack.c.bf16 %v181, %v180
    %v189 = vpack.c.bf16 %v183, %v182
    %v190 = vpack.c.bf16 %v185, %v184
    %v191 = vpack.c.bf16 %v187, %v186
    %v192 = vld [vmem:[#allocation5] sm:$0xf]
    %v193 = vld [vmem:[#allocation5 + $0x4] sm:$0xf]
    %v194 = vld [vmem:[#allocation5 + $0x8] sm:$0xf]
    %v195 = vld [vmem:[#allocation5 + $0xc] sm:$0xf]
    %v196 = vld [vmem:[#allocation5 + $0x10] sm:$0xf]
    %v197 = vld [vmem:[#allocation5 + $0x14] sm:$0xf]
    %v198 = vld [vmem:[#allocation5 + $0x18] sm:$0xf]
    %v199 = vld [vmem:[#allocation5 + $0x1c] sm:$0xf]
    %v200 = vld [vmem:[#allocation5 + $0x20] sm:$0xf]
    %v201 = vld [vmem:[#allocation5 + $0x24] sm:$0xf]
    %v202 = vld [vmem:[#allocation5 + $0x28] sm:$0xf]
    %v203 = vld [vmem:[#allocation5 + $0x2c] sm:$0xf]
    %v204 = vld [vmem:[#allocation5 + $0x30] sm:$0xf]
    %v205 = vld [vmem:[#allocation5 + $0x34] sm:$0xf]
    %v206 = vld [vmem:[#allocation5 + $0x38] sm:$0xf]
    %v207 = vld [vmem:[#allocation5 + $0x3c] sm:$0xf]
    %v224 = vunpack.c.l.b16 %v192
    %v225 = vunpack.c.l.b16 %v193
    %v226 = vunpack.c.l.b16 %v194
    %v227 = vunpack.c.l.b16 %v195
    %v228 = vunpack.c.l.b16 %v196
    %v229 = vunpack.c.l.b16 %v197
    %v230 = vunpack.c.l.b16 %v198
    %v231 = vunpack.c.l.b16 %v199
    %v232 = vunpack.c.l.b16 %v200
    %v233 = vunpack.c.l.b16 %v201
    %v234 = vunpack.c.l.b16 %v202
    %v235 = vunpack.c.l.b16 %v203
    %v236 = vunpack.c.l.b16 %v204
    %v237 = vunpack.c.l.b16 %v205
    %v238 = vunpack.c.l.b16 %v206
    %v239 = vunpack.c.l.b16 %v207
    %v240 = vpack.c.b16 %v225, %v224
    %v241 = vpack.c.b16 %v227, %v226
    %v242 = vpack.c.b16 %v229, %v228
    %v243 = vpack.c.b16 %v231, %v230
    %v244 = vpack.c.b16 %v233, %v232
    %v245 = vpack.c.b16 %v235, %v234
    %v246 = vpack.c.b16 %v237, %v236
    %v247 = vpack.c.b16 %v239, %v238
    %256 = vmatprep.subr.bf16.mxu0 0
    %257 = vmatpush1.bf16.msra.mxu0 %v247
    %258 = vmatprep.subr.bf16.mxu0 0
    %259 = vmatpush1.bf16.msra.mxu0 %v246
    %260 = vmatprep.subr.bf16.mxu0 0
    %261 = vmatpush1.bf16.msra.mxu0 %v245
    %262 = vmatprep.subr.bf16.mxu0 0
    %263 = vmatpush1.bf16.msra.mxu0 %v244
    %264 = vmatprep.subr.bf16.mxu0 0
    %265 = vmatpush1.bf16.msra.mxu0 %v243
    %266 = vmatprep.subr.bf16.mxu0 0
    %267 = vmatpush1.bf16.msra.mxu0 %v242
    %268 = vmatprep.subr.bf16.mxu0 0
    %269 = vmatpush1.bf16.msra.mxu0 %v241
    %270 = vmatprep.subr.bf16.mxu0 0
    %271 = vmatpush1.bf16.msra.mxu0 %v240
    %272 = vmatprep.subr.bf16.mxu0 0
    %273 = vmatpush2.bf16.msra.mxu0 0
    %274 = vmatprep.subr.bf16.mxu0 0
    %275 = vmatpush2.bf16.msra.mxu0 0
    %276 = vmatprep.subr.bf16.mxu0 0
    %277 = vmatpush2.bf16.msra.mxu0 0
    %278 = vmatprep.subr.bf16.mxu0 0
    %279 = vmatpush2.bf16.msra.mxu0 0
    %280 = vmatprep.subr.bf16.mxu0 0
    %281 = vmatpush2.bf16.msra.mxu0 0
    %282 = vmatprep.subr.bf16.mxu0 0
    %283 = vmatpush2.bf16.msra.mxu0 0
    %284 = vmatprep.subr.bf16.mxu0 0
    %285 = vmatpush2.bf16.msra.mxu0 0
    %286 = vmatprep.subr.bf16.mxu0 0
    %287 = vmatpush2.bf16.msra.mxu0 0
    %288 = vmatprep.mubr.bf16.mxu0 0
    %289 = vmatmul.mubr.bf16.gmra.mxu0 %v188
    %v290 = vpop.f32.mrf.mxu0
    %v291 = vadd.f32 0.0, %v290
    %v292 = vpop.f32.mrf.mxu0
    %v293 = vpop.f32.mrf.mxu0
    %v294 = vadd.f32 0.0, %v293
    %v295 = vpop.f32.mrf.mxu0
    %296 = vmatprep.mubr.bf16.mxu0 0
    %297 = vmatmul.mubr.bf16.gmra.mxu0 %v189
    %v298 = vpop.f32.mrf.mxu0
    %v299 = vadd.f32 0.0, %v298
    %v300 = vpop.f32.mrf.mxu0
    %v301 = vpop.f32.mrf.mxu0
    %v302 = vadd.f32 0.0, %v301
    %v303 = vpop.f32.mrf.mxu0
    %304 = vmatprep.mubr.bf16.mxu0 0
    %305 = vmatmul.mubr.bf16.gmra.mxu0 %v190
    %v306 = vpop.f32.mrf.mxu0
    %v307 = vadd.f32 0.0, %v306
    %v308 = vpop.f32.mrf.mxu0
    %v309 = vpop.f32.mrf.mxu0
    %v310 = vadd.f32 0.0, %v309
    %v311 = vpop.f32.mrf.mxu0
    %312 = vmatprep.mubr.bf16.mxu0 0
    %313 = vmatmul.mubr.bf16.gmra.mxu0 %v191
    %v314 = vpop.f32.mrf.mxu0
    %v315 = vadd.f32 0.0, %v314
    %v316 = vpop.f32.mrf.mxu0
    %v317 = vpop.f32.mrf.mxu0
    %v318 = vadd.f32 0.0, %v317
    %v319 = vpop.f32.mrf.mxu0
    %320 = vdwg.mxu0
    %v321 = vadd.f32 %v180, %v291
    %v322 = vadd.f32 %v181, %v294
    %v323 = vadd.f32 %v182, %v299
    %v324 = vadd.f32 %v183, %v302
    %v325 = vadd.f32 %v184, %v307
    %v326 = vadd.f32 %v185, %v310
    %v327 = vadd.f32 %v186, %v315
    %v328 = vadd.f32 %v187, %v318
    %v329 = vld [vmem:[%s2] sm:$0x1]
    %v331 = vlaneseq
    %v332 = vshrl.u32 %v331, 7
    %v333 = vsub.s32 0, %v332
    %v334 = vrot.slane %v329, %v333
    %v336 = vadd.f32 %v321, %v334
    %v337 = vadd.f32 %v322, %v334
    %v338 = vadd.f32 %v323, %v334
    %v339 = vadd.f32 %v324, %v334
    %v340 = vadd.f32 %v325, %v334
    %v341 = vadd.f32 %v326, %v334
    %v342 = vadd.f32 %v327, %v334
    %v343 = vadd.f32 %v328, %v334
    %v344 = vmax.f32 %v336, 0.0
    %v345 = vmax.f32 %v337, 0.0
    %v346 = vmax.f32 %v338, 0.0
    %v347 = vmax.f32 %v339, 0.0
    %v348 = vmax.f32 %v340, 0.0
    %v349 = vmax.f32 %v341, 0.0
    %v350 = vmax.f32 %v342, 0.0
    %v351 = vmax.f32 %v343, 0.0
    %v352 = vpack.c.bf16 %v345, %v344
    %v353 = vpack.c.bf16 %v347, %v346
    %v354 = vpack.c.bf16 %v349, %v348
    %v355 = vpack.c.bf16 %v351, %v350
    %v356 = vld [vmem:[#allocation7] sm:$0xff]
    %v357 = vld [vmem:[#allocation7 + $0x8] sm:$0xf]
    %v358 = vld [vmem:[#allocation7 + $0xc] sm:$0xff]
    %v359 = vld [vmem:[#allocation7 + $0x14] sm:$0xf]
    %v360 = vld [vmem:[#allocation7 + $0x18] sm:$0xff]
    %v361 = vld [vmem:[#allocation7 + $0x20] sm:$0xf]
    %v362 = vld [vmem:[#allocation7 + $0x24] sm:$0xff]
    %v363 = vld [vmem:[#allocation7 + $0x2c] sm:$0xf]
    %v364 = vld [vmem:[#allocation7 + $0x30] sm:$0xff]
    %v365 = vld [vmem:[#allocation7 + $0x38] sm:$0xf]
    %v366 = vld [vmem:[#allocation7 + $0x3c] sm:$0xff]
    %v367 = vld [vmem:[#allocation7 + $0x44] sm:$0xf]
    %v368 = vld [vmem:[#allocation7 + $0x48] sm:$0xff]
    %v369 = vld [vmem:[#allocation7 + $0x50] sm:$0xf]
    %v370 = vld [vmem:[#allocation7 + $0x54] sm:$0xff]
    %v371 = vld [vmem:[#allocation7 + $0x5c] sm:$0xf]
    %v372 = vld [vmem:[#allocation7 + $0x60] sm:$0xff]
    %v373 = vld [vmem:[#allocation7 + $0x68] sm:$0xf]
    %v374 = vld [vmem:[#allocation7 + $0x6c] sm:$0xff]
    %v375 = vld [vmem:[#allocation7 + $0x74] sm:$0xf]
    %v376 = vld [vmem:[#allocation7 + $0x78] sm:$0xff]
    %v377 = vld [vmem:[#allocation7 + $0x80] sm:$0xf]
    %v378 = vld [vmem:[#allocation7 + $0x84] sm:$0xff]
    %v379 = vld [vmem:[#allocation7 + $0x8c] sm:$0xf]
    %v380 = vld [vmem:[#allocation7 + $0x90] sm:$0xff]
    %v381 = vld [vmem:[#allocation7 + $0x98] sm:$0xf]
    %v382 = vld [vmem:[#allocation7 + $0x9c] sm:$0xff]
    %v383 = vld [vmem:[#allocation7 + $0xa4] sm:$0xf]
    %v384 = vld [vmem:[#allocation7 + $0xa8] sm:$0xff]
    %v385 = vld [vmem:[#allocation7 + $0xb0] sm:$0xf]
    %v386 = vld [vmem:[#allocation7 + $0xb4] sm:$0xff]
    %v387 = vld [vmem:[#allocation7 + $0xbc] sm:$0xf]
    %v388 = vld [vmem:[%s5] sm:$0x7]
    %v390 = vlaneseq
    %v391 = vshrl.u32 %v390, 7
    %v392 = vsub.s32 0, %v391
    %v393 = vrot.slane %v388, %v392
    %v394 = vlaneseq
    %v395 = vshrl.u32 %v394, 7
    %v396 = vsub.s32 1, %v395
    %v397 = vrot.slane %v388, %v396
    %v398 = vlaneseq
    %v399 = vshrl.u32 %v398, 7
    %v400 = vsub.s32 2, %v399
    %v401 = vrot.slane %v388, %v400
    %v437 = vunpack.c.l.b16 %v356
    %v438 = vunpack.c.h.b16 %v356
    %v439 = vunpack.c.l.b16 %v357
    %v440 = vunpack.c.l.b16 %v358
    %v441 = vunpack.c.h.b16 %v358
    %v442 = vunpack.c.l.b16 %v359
    %v443 = vunpack.c.l.b16 %v360
    %v444 = vunpack.c.h.b16 %v360
    %v445 = vunpack.c.l.b16 %v361
    %v446 = vunpack.c.l.b16 %v362
    %v447 = vunpack.c.h.b16 %v362
    %v448 = vunpack.c.l.b16 %v363
    %v449 = vunpack.c.l.b16 %v364
    %v450 = vunpack.c.h.b16 %v364
    %v451 = vunpack.c.l.b16 %v365
    %v452 = vunpack.c.l.b16 %v366
    %v453 = vunpack.c.h.b16 %v366
    %v454 = vunpack.c.l.b16 %v367
    %v455 = vunpack.c.l.b16 %v368
    %v456 = vunpack.c.h.b16 %v368
    %v457 = vunpack.c.l.b16 %v369
    %v458 = vunpack.c.l.b16 %v370
    %v459 = vunpack.c.h.b16 %v370
    %v460 = vunpack.c.l.b16 %v371
    %v461 = vunpack.c.l.b16 %v372
    %v462 = vunpack.c.h.b16 %v372
    %v463 = vunpack.c.l.b16 %v373
    %v464 = vunpack.c.l.b16 %v374
    %v465 = vunpack.c.h.b16 %v374
    %v466 = vunpack.c.l.b16 %v375
    %v467 = vunpack.c.l.b16 %v376
    %v468 = vunpack.c.h.b16 %v376
    %v469 = vunpack.c.l.b16 %v377
    %v470 = vunpack.c.l.b16 %v378
    %v471 = vunpack.c.h.b16 %v378
    %v472 = vunpack.c.l.b16 %v379
    %v473 = vunpack.c.l.b16 %v380
    %v474 = vunpack.c.h.b16 %v380
    %v475 = vunpack.c.l.b16 %v381
    %v476 = vunpack.c.l.b16 %v382
    %v477 = vunpack.c.h.b16 %v382
    %v478 = vunpack.c.l.b16 %v383
    %v479 = vunpack.c.l.b16 %v384
    %v480 = vunpack.c.h.b16 %v384
    %v481 = vunpack.c.l.b16 %v385
    %v482 = vunpack.c.l.b16 %v386
    %v483 = vunpack.c.h.b16 %v386
    %v484 = vunpack.c.l.b16 %v387
    %v485 = vpack.c.b16 %v440, %v437
    %v486 = vpack.c.b16 %v441, %v438
    %v487 = vpack.c.b16 %v442, %v439
    %v488 = vpack.c.b16 %v446, %v443
    %v489 = vpack.c.b16 %v447, %v444
    %v490 = vpack.c.b16 %v448, %v445
    %v491 = vpack.c.b16 %v452, %v449
    %v492 = vpack.c.b16 %v453, %v450
    %v493 = vpack.c.b16 %v454, %v451
    %v494 = vpack.c.b16 %v458, %v455
    %v495 = vpack.c.b16 %v459, %v456
    %v496 = vpack.c.b16 %v460, %v457
    %v497 = vpack.c.b16 %v464, %v461
    %v498 = vpack.c.b16 %v465, %v462
    %v499 = vpack.c.b16 %v466, %v463
    %v500 = vpack.c.b16 %v470, %v467
    %v501 = vpack.c.b16 %v471, %v468
    %v502 = vpack.c.b16 %v472, %v469
    %v503 = vpack.c.b16 %v476, %v473
    %v504 = vpack.c.b16 %v477, %v474
    %v505 = vpack.c.b16 %v478, %v475
    %v506 = vpack.c.b16 %v482, %v479
    %v507 = vpack.c.b16 %v483, %v480
    %v508 = vpack.c.b16 %v484, %v481
    %533 = vmatprep.subr.bf16.mxu0 %v507
    %534 = vmatpush1.bf16.msra.mxu0 %v506
    %535 = vmatprep.subr.bf16.mxu0 %v504
    %536 = vmatpush1.bf16.msra.mxu0 %v503
    %537 = vmatprep.subr.bf16.mxu0 %v501
    %538 = vmatpush1.bf16.msra.mxu0 %v500
    %539 = vmatprep.subr.bf16.mxu0 %v498
    %540 = vmatpush1.bf16.msra.mxu0 %v497
    %541 = vmatprep.subr.bf16.mxu0 %v495
    %542 = vmatpush1.bf16.msra.mxu0 %v494
    %543 = vmatprep.subr.bf16.mxu0 %v492
    %544 = vmatpush1.bf16.msra.mxu0 %v491
    %545 = vmatprep.subr.bf16.mxu0 %v489
    %546 = vmatpush1.bf16.msra.mxu0 %v488
    %547 = vmatprep.subr.bf16.mxu0 %v486
    %548 = vmatpush1.bf16.msra.mxu0 %v485
    %549 = vmatprep.subr.bf16.mxu0 0
    %550 = vmatpush2.bf16.msra.mxu0 0
    %551 = vmatprep.subr.bf16.mxu0 0
    %552 = vmatpush2.bf16.msra.mxu0 0
    %553 = vmatprep.subr.bf16.mxu0 0
    %554 = vmatpush2.bf16.msra.mxu0 0
    %555 = vmatprep.subr.bf16.mxu0 0
    %556 = vmatpush2.bf16.msra.mxu0 0
    %557 = vmatprep.subr.bf16.mxu0 0
    %558 = vmatpush2.bf16.msra.mxu0 0
    %559 = vmatprep.subr.bf16.mxu0 0
    %560 = vmatpush2.bf16.msra.mxu0 0
    %561 = vmatprep.subr.bf16.mxu0 0
    %562 = vmatpush2.bf16.msra.mxu0 0
    %563 = vmatprep.subr.bf16.mxu0 0
    %564 = vmatpush2.bf16.msra.mxu0 0
    %565 = vmatprep.mubr.bf16.mxu0 0
    %566 = vmatmul.mubr.bf16.gmra.mxu0 %v352
    %v567 = vpop.f32.mrf.mxu0
    %v568 = vadd.f32 %v393, %v567
    %v569 = vpop.f32.mrf.mxu0
    %v570 = vadd.f32 %v397, %v569
    %v571 = vpop.f32.mrf.mxu0
    %v572 = vadd.f32 %v393, %v571
    %v573 = vpop.f32.mrf.mxu0
    %v574 = vadd.f32 %v397, %v573
    %575 = vmatprep.mubr.bf16.mxu0 0
    %576 = vmatmul.mubr.bf16.gmra.mxu0 %v353
    %v577 = vpop.f32.mrf.mxu0
    %v578 = vadd.f32 %v393, %v577
    %v579 = vpop.f32.mrf.mxu0
    %v580 = vadd.f32 %v397, %v579
    %v581 = vpop.f32.mrf.mxu0
    %v582 = vadd.f32 %v393, %v581
    %v583 = vpop.f32.mrf.mxu0
    %v584 = vadd.f32 %v397, %v583
    %585 = vmatprep.mubr.bf16.mxu0 0
    %586 = vmatmul.mubr.bf16.gmra.mxu0 %v354
    %v587 = vpop.f32.mrf.mxu0
    %v588 = vadd.f32 %v393, %v587
    %v589 = vpop.f32.mrf.mxu0
    %v590 = vadd.f32 %v397, %v589
    %v591 = vpop.f32.mrf.mxu0
    %v592 = vadd.f32 %v393, %v591
    %v593 = vpop.f32.mrf.mxu0
    %v594 = vadd.f32 %v397, %v593
    %595 = vmatprep.mubr.bf16.mxu0 0
    %596 = vmatmul.mubr.bf16.gmra.mxu0 %v355
    %v597 = vpop.f32.mrf.mxu0
    %v598 = vadd.f32 %v393, %v597
    %v599 = vpop.f32.mrf.mxu0
    %v600 = vadd.f32 %v397, %v599
    %v601 = vpop.f32.mrf.mxu0
    %v602 = vadd.f32 %v393, %v601
    %v603 = vpop.f32.mrf.mxu0
    %v604 = vadd.f32 %v397, %v603
    %605 = vdwg.mxu0
    %606 = vmatprep.subr.bf16.mxu0 0
    %607 = vmatpush1.bf16.msra.mxu0 %v508
    %608 = vmatprep.subr.bf16.mxu0 0
    %609 = vmatpush1.bf16.msra.mxu0 %v505
    %610 = vmatprep.subr.bf16.mxu0 0
    %611 = vmatpush1.bf16.msra.mxu0 %v502
    %612 = vmatprep.subr.bf16.mxu0 0
    %613 = vmatpush1.bf16.msra.mxu0 %v499
    %614 = vmatprep.subr.bf16.mxu0 0
    %615 = vmatpush1.bf16.msra.mxu0 %v496
    %616 = vmatprep.subr.bf16.mxu0 0
    %617 = vmatpush1.bf16.msra.mxu0 %v493
    %618 = vmatprep.subr.bf16.mxu0 0
    %619 = vmatpush1.bf16.msra.mxu0 %v490
    %620 = vmatprep.subr.bf16.mxu0 0
    %621 = vmatpush1.bf16.msra.mxu0 %v487
    %622 = vmatprep.subr.bf16.mxu0 0
    %623 = vmatpush2.bf16.msra.mxu0 0
    %624 = vmatprep.subr.bf16.mxu0 0
    %625 = vmatpush2.bf16.msra.mxu0 0
    %626 = vmatprep.subr.bf16.mxu0 0
    %627 = vmatpush2.bf16.msra.mxu0 0
    %628 = vmatprep.subr.bf16.mxu0 0
    %629 = vmatpush2.bf16.msra.mxu0 0
    %630 = vmatprep.subr.bf16.mxu0 0
    %631 = vmatpush2.bf16.msra.mxu0 0
    %632 = vmatprep.subr.bf16.mxu0 0
    %633 = vmatpush2.bf16.msra.mxu0 0
    %634 = vmatprep.subr.bf16.mxu0 0
    %635 = vmatpush2.bf16.msra.mxu0 0
    %636 = vmatprep.subr.bf16.mxu0 0
    %637 = vmatpush2.bf16.msra.mxu0 0
    %638 = vmatprep.mubr.bf16.mxu0 0
    %639 = vmatmul.mubr.bf16.gmra.mxu0 %v352
    %v640 = vpop.f32.mrf.mxu0
    %v641 = vadd.f32 %v401, %v640
    %v642 = vpop.f32.mrf.mxu0
    %v643 = vpop.f32.mrf.mxu0
    %v644 = vadd.f32 %v401, %v643
    %v645 = vpop.f32.mrf.mxu0
    %646 = vmatprep.mubr.bf16.mxu0 0
    %647 = vmatmul.mubr.bf16.gmra.mxu0 %v353
    %v648 = vpop.f32.mrf.mxu0
    %v649 = vadd.f32 %v401, %v648
    %v650 = vpop.f32.mrf.mxu0
    %v651 = vpop.f32.mrf.mxu0
    %v652 = vadd.f32 %v401, %v651
    %v653 = vpop.f32.mrf.mxu0
    %654 = vmatprep.mubr.bf16.mxu0 0
    %655 = vmatmul.mubr.bf16.gmra.mxu0 %v354
    %v656 = vpop.f32.mrf.mxu0
    %v657 = vadd.f32 %v401, %v656
    %v658 = vpop.f32.mrf.mxu0
    %v659 = vpop.f32.mrf.mxu0
    %v660 = vadd.f32 %v401, %v659
    %v661 = vpop.f32.mrf.mxu0
    %662 = vmatprep.mubr.bf16.mxu0 0
    %663 = vmatmul.mubr.bf16.gmra.mxu0 %v355
    %v664 = vpop.f32.mrf.mxu0
    %v665 = vadd.f32 %v401, %v664
    %v666 = vpop.f32.mrf.mxu0
    %v667 = vpop.f32.mrf.mxu0
    %v668 = vadd.f32 %v401, %v667
    %v669 = vpop.f32.mrf.mxu0
    %670 = vdwg.mxu0
    %v671 = vld [vmem:[#allocation8] sm:$0xff]
    %v672 = vld [vmem:[#allocation8 + $0x8] sm:$0xf]
    %v673 = vld [vmem:[#allocation8 + $0xc] sm:$0xff]
    %v674 = vld [vmem:[#allocation8 + $0x14] sm:$0xf]
    %v675 = vld [vmem:[#allocation8 + $0x18] sm:$0xff]
    %v676 = vld [vmem:[#allocation8 + $0x20] sm:$0xf]
    %v677 = vld [vmem:[#allocation8 + $0x24] sm:$0xff]
    %v678 = vld [vmem:[#allocation8 + $0x2c] sm:$0xf]
    %v679 = vld [vmem:[#allocation8 + $0x30] sm:$0xff]
    %v680 = vld [vmem:[#allocation8 + $0x38] sm:$0xf]
    %v681 = vld [vmem:[#allocation8 + $0x3c] sm:$0xff]
    %v682 = vld [vmem:[#allocation8 + $0x44] sm:$0xf]
    %v683 = vld [vmem:[#allocation8 + $0x48] sm:$0xff]
    %v684 = vld [vmem:[#allocation8 + $0x50] sm:$0xf]
    %v685 = vld [vmem:[#allocation8 + $0x54] sm:$0xff]
    %v686 = vld [vmem:[#allocation8 + $0x5c] sm:$0xf]
    %v687 = vld [vmem:[#allocation8 + $0x60] sm:$0xff]
    %v688 = vld [vmem:[#allocation8 + $0x68] sm:$0xf]
    %v689 = vld [vmem:[#allocation8 + $0x6c] sm:$0xff]
    %v690 = vld [vmem:[#allocation8 + $0x74] sm:$0xf]
    %v691 = vld [vmem:[#allocation8 + $0x78] sm:$0xff]
    %v692 = vld [vmem:[#allocation8 + $0x80] sm:$0xf]
    %v693 = vld [vmem:[#allocation8 + $0x84] sm:$0xff]
    %v694 = vld [vmem:[#allocation8 + $0x8c] sm:$0xf]
    %v695 = vld [vmem:[#allocation8 + $0x90] sm:$0xff]
    %v696 = vld [vmem:[#allocation8 + $0x98] sm:$0xf]
    %v697 = vld [vmem:[#allocation8 + $0x9c] sm:$0xff]
    %v698 = vld [vmem:[#allocation8 + $0xa4] sm:$0xf]
    %v699 = vld [vmem:[#allocation8 + $0xa8] sm:$0xff]
    %v700 = vld [vmem:[#allocation8 + $0xb0] sm:$0xf]
    %v701 = vld [vmem:[#allocation8 + $0xb4] sm:$0xff]
    %v702 = vld [vmem:[#allocation8 + $0xbc] sm:$0xf]
    %v703 = vld [vmem:[%s6] sm:$0x1]
    %v705 = vlaneseq
    %v706 = vshrl.u32 %v705, 7
    %v707 = vsub.s32 0, %v706
    %v708 = vrot.slane %v703, %v707
    %v742 = vunpack.c.l.b16 %v671
    %v743 = vunpack.c.h.b16 %v671
    %v744 = vunpack.c.l.b16 %v672
    %v745 = vunpack.c.l.b16 %v673
    %v746 = vunpack.c.h.b16 %v673
    %v747 = vunpack.c.l.b16 %v674
    %v748 = vunpack.c.l.b16 %v675
    %v749 = vunpack.c.h.b16 %v675
    %v750 = vunpack.c.l.b16 %v676
    %v751 = vunpack.c.l.b16 %v677
    %v752 = vunpack.c.h.b16 %v677
    %v753 = vunpack.c.l.b16 %v678
    %v754 = vunpack.c.l.b16 %v679
    %v755 = vunpack.c.h.b16 %v679
    %v756 = vunpack.c.l.b16 %v680
    %v757 = vunpack.c.l.b16 %v681
    %v758 = vunpack.c.h.b16 %v681
    %v759 = vunpack.c.l.b16 %v682
    %v760 = vunpack.c.l.b16 %v683
    %v761 = vunpack.c.h.b16 %v683
    %v762 = vunpack.c.l.b16 %v684
    %v763 = vunpack.c.l.b16 %v685
    %v764 = vunpack.c.h.b16 %v685
    %v765 = vunpack.c.l.b16 %v686
    %v766 = vunpack.c.l.b16 %v687
    %v767 = vunpack.c.h.b16 %v687
    %v768 = vunpack.c.l.b16 %v688
    %v769 = vunpack.c.l.b16 %v689
    %v770 = vunpack.c.h.b16 %v689
    %v771 = vunpack.c.l.b16 %v690
    %v772 = vunpack.c.l.b16 %v691
    %v773 = vunpack.c.h.b16 %v691
    %v774 = vunpack.c.l.b16 %v692
    %v775 = vunpack.c.l.b16 %v693
    %v776 = vunpack.c.h.b16 %v693
    %v777 = vunpack.c.l.b16 %v694
    %v778 = vunpack.c.l.b16 %v695
    %v779 = vunpack.c.h.b16 %v695
    %v780 = vunpack.c.l.b16 %v696
    %v781 = vunpack.c.l.b16 %v697
    %v782 = vunpack.c.h.b16 %v697
    %v783 = vunpack.c.l.b16 %v698
    %v784 = vunpack.c.l.b16 %v699
    %v785 = vunpack.c.h.b16 %v699
    %v786 = vunpack.c.l.b16 %v700
    %v787 = vunpack.c.l.b16 %v701
    %v788 = vunpack.c.h.b16 %v701
    %v789 = vunpack.c.l.b16 %v702
    %v790 = vpack.c.b16 %v745, %v742
    %v791 = vpack.c.b16 %v746, %v743
    %v792 = vpack.c.b16 %v747, %v744
    %v793 = vpack.c.b16 %v751, %v748
    %v794 = vpack.c.b16 %v752, %v749
    %v795 = vpack.c.b16 %v753, %v750
    %v796 = vpack.c.b16 %v757, %v754
    %v797 = vpack.c.b16 %v758, %v755
    %v798 = vpack.c.b16 %v759, %v756
    %v799 = vpack.c.b16 %v763, %v760
    %v800 = vpack.c.b16 %v764, %v761
    %v801 = vpack.c.b16 %v765, %v762
    %v802 = vpack.c.b16 %v769, %v766
    %v803 = vpack.c.b16 %v770, %v767
    %v804 = vpack.c.b16 %v771, %v768
    %v805 = vpack.c.b16 %v775, %v772
    %v806 = vpack.c.b16 %v776, %v773
    %v807 = vpack.c.b16 %v777, %v774
    %v808 = vpack.c.b16 %v781, %v778
    %v809 = vpack.c.b16 %v782, %v779
    %v810 = vpack.c.b16 %v783, %v780
    %v811 = vpack.c.b16 %v787, %v784
    %v812 = vpack.c.b16 %v788, %v785
    %v813 = vpack.c.b16 %v789, %v786
    %838 = vmatprep.subr.bf16.mxu0 %v812
    %839 = vmatpush1.bf16.msra.mxu0 %v811
    %840 = vmatprep.subr.bf16.mxu0 %v809
    %841 = vmatpush1.bf16.msra.mxu0 %v808
    %842 = vmatprep.subr.bf16.mxu0 %v806
    %843 = vmatpush1.bf16.msra.mxu0 %v805
    %844 = vmatprep.subr.bf16.mxu0 %v803
    %845 = vmatpush1.bf16.msra.mxu0 %v802
    %846 = vmatprep.subr.bf16.mxu0 %v800
    %847 = vmatpush1.bf16.msra.mxu0 %v799
    %848 = vmatprep.subr.bf16.mxu0 %v797
    %849 = vmatpush1.bf16.msra.mxu0 %v796
    %850 = vmatprep.subr.bf16.mxu0 %v794
    %851 = vmatpush1.bf16.msra.mxu0 %v793
    %852 = vmatprep.subr.bf16.mxu0 %v791
    %853 = vmatpush1.bf16.msra.mxu0 %v790
    %854 = vmatprep.subr.bf16.mxu0 0
    %855 = vmatpush2.bf16.msra.mxu0 0
    %856 = vmatprep.subr.bf16.mxu0 0
    %857 = vmatpush2.bf16.msra.mxu0 0
    %858 = vmatprep.subr.bf16.mxu0 0
    %859 = vmatpush2.bf16.msra.mxu0 0
    %860 = vmatprep.subr.bf16.mxu0 0
    %861 = vmatpush2.bf16.msra.mxu0 0
    %862 = vmatprep.subr.bf16.mxu0 0
    %863 = vmatpush2.bf16.msra.mxu0 0
    %864 = vmatprep.subr.bf16.mxu0 0
    %865 = vmatpush2.bf16.msra.mxu0 0
    %866 = vmatprep.subr.bf16.mxu0 0
    %867 = vmatpush2.bf16.msra.mxu0 0
    %868 = vmatprep.subr.bf16.mxu0 0
    %869 = vmatpush2.bf16.msra.mxu0 0
    %870 = vmatprep.mubr.bf16.mxu0 0
    %871 = vmatmul.mubr.bf16.gmra.mxu0 0
    %v872 = vpop.f32.mrf.mxu0
    %v873 = vadd.f32 0.0, %v872
    %v874 = vpop.f32.mrf.mxu0
    %v875 = vadd.f32 0.0, %v874
    %v876 = vpop.f32.mrf.mxu0
    %v877 = vpop.f32.mrf.mxu0
    %878 = vdwg.mxu0
    %879 = vmatprep.subr.bf16.mxu0 0
    %880 = vmatpush1.bf16.msra.mxu0 %v813
    %881 = vmatprep.subr.bf16.mxu0 0
    %882 = vmatpush1.bf16.msra.mxu0 %v810
    %883 = vmatprep.subr.bf16.mxu0 0
    %884 = vmatpush1.bf16.msra.mxu0 %v807
    %885 = vmatprep.subr.bf16.mxu0 0
    %886 = vmatpush1.bf16.msra.mxu0 %v804
    %887 = vmatprep.subr.bf16.mxu0 0
    %888 = vmatpush1.bf16.msra.mxu0 %v801
    %889 = vmatprep.subr.bf16.mxu0 0
    %890 = vmatpush1.bf16.msra.mxu0 %v798
    %891 = vmatprep.subr.bf16.mxu0 0
    %892 = vmatpush1.bf16.msra.mxu0 %v795
    %893 = vmatprep.subr.bf16.mxu0 0
    %894 = vmatpush1.bf16.msra.mxu0 %v792
    %895 = vmatprep.subr.bf16.mxu0 0
    %896 = vmatpush2.bf16.msra.mxu0 0
    %897 = vmatprep.subr.bf16.mxu0 0
    %898 = vmatpush2.bf16.msra.mxu0 0
    %899 = vmatprep.subr.bf16.mxu0 0
    %900 = vmatpush2.bf16.msra.mxu0 0
    %901 = vmatprep.subr.bf16.mxu0 0
    %902 = vmatpush2.bf16.msra.mxu0 0
    %903 = vmatprep.subr.bf16.mxu0 0
    %904 = vmatpush2.bf16.msra.mxu0 0
    %905 = vmatprep.subr.bf16.mxu0 0
    %906 = vmatpush2.bf16.msra.mxu0 0
    %907 = vmatprep.subr.bf16.mxu0 0
    %908 = vmatpush2.bf16.msra.mxu0 0
    %909 = vmatprep.subr.bf16.mxu0 0
    %910 = vmatpush2.bf16.msra.mxu0 0
    %911 = vmatprep.mubr.bf16.mxu0 0
    %912 = vmatmul.mubr.bf16.gmra.mxu0 0
    %v913 = vpop.f32.mrf.mxu0
    %v914 = vadd.f32 0.0, %v913
    %v915 = vpop.f32.mrf.mxu0
    %v916 = vpop.f32.mrf.mxu0
    %v917 = vpop.f32.mrf.mxu0
    %918 = vdwg.mxu0
    %v919 = vadd.f32 %v568, %v873
    %v920 = vxor.u32 %v919, 2147483648
    %v921 = vmul.f32 %v920, 1.442695
    %v922 = vpow.pop %v921
    %v923 = vadd.f32 %v922, 1.0
    %v924 = vrcp.pop %v923
    %v925 = vmul.f32 1.0, %v924
    %v926 = vadd.f32 %v570, %v875
    %v927 = vxor.u32 %v926, 2147483648
    %v928 = vmul.f32 %v927, 1.442695
    %v929 = vpow.pop %v928
    %v930 = vadd.f32 %v929, 1.0
    %v931 = vrcp.pop %v930
    %v932 = vmul.f32 1.0, %v931
    %v933 = vadd.f32 %v914, %v708
    %v934 = vmul.f32 %v925, %v933
    %v935 = vadd.f32 %v641, %v934
    %v936 = vtanh.pop %v935
    %v937 = vsub.f32 1.0, %v932
    %v938 = vmul.f32 %v937, %v936
    %v939 = vmul.f32 %v932, 0.0
    %v940 = vadd.f32 %v938, %v939
    %v941 = vpack.c.bf16 %v940, %v940
    %942 = vmatprep.subr.bf16.mxu0 %v812
    %943 = vmatpush1.bf16.msra.mxu0 %v811
    %944 = vmatprep.subr.bf16.mxu0 %v809
    %945 = vmatpush1.bf16.msra.mxu0 %v808
    %946 = vmatprep.subr.bf16.mxu0 %v806
    %947 = vmatpush1.bf16.msra.mxu0 %v805
    %948 = vmatprep.subr.bf16.mxu0 %v803
    %949 = vmatpush1.bf16.msra.mxu0 %v802
    %950 = vmatprep.subr.bf16.mxu0 %v800
    %951 = vmatpush1.bf16.msra.mxu0 %v799
    %952 = vmatprep.subr.bf16.mxu0 %v797
    %953 = vmatpush1.bf16.msra.mxu0 %v796
    %954 = vmatprep.subr.bf16.mxu0 %v794
    %955 = vmatpush1.bf16.msra.mxu0 %v793
    %956 = vmatprep.subr.bf16.mxu0 %v791
    %957 = vmatpush1.bf16.msra.mxu0 %v790
    %958 = vmatprep.subr.bf16.mxu0 0
    %959 = vmatpush2.bf16.msra.mxu0 0
    %960 = vmatprep.subr.bf16.mxu0 0
    %961 = vmatpush2.bf16.msra.mxu0 0
    %962 = vmatprep.subr.bf16.mxu0 0
    %963 = vmatpush2.bf16.msra.mxu0 0
    %964 = vmatprep.subr.bf16.mxu0 0
    %965 = vmatpush2.bf16.msra.mxu0 0
    %966 = vmatprep.subr.bf16.mxu0 0
    %967 = vmatpush2.bf16.msra.mxu0 0
    %968 = vmatprep.subr.bf16.mxu0 0
    %969 = vmatpush2.bf16.msra.mxu0 0
    %970 = vmatprep.subr.bf16.mxu0 0
    %971 = vmatpush2.bf16.msra.mxu0 0
    %972 = vmatprep.subr.bf16.mxu0 0
    %973 = vmatpush2.bf16.msra.mxu0 0
    %974 = vmatprep.mubr.bf16.mxu0 0
    %975 = vmatmul.mubr.bf16.gmra.mxu0 %v941
    %v976 = vpop.f32.mrf.mxu0
    %v977 = vadd.f32 0.0, %v976
    %v978 = vpop.f32.mrf.mxu0
    %v979 = vadd.f32 0.0, %v978
    %v980 = vpop.f32.mrf.mxu0
    %v981 = vpop.f32.mrf.mxu0
    %982 = vdwg.mxu0
    %983 = vmatprep.subr.bf16.mxu0 0
    %984 = vmatpush1.bf16.msra.mxu0 %v813
    %985 = vmatprep.subr.bf16.mxu0 0
    %986 = vmatpush1.bf16.msra.mxu0 %v810
    %987 = vmatprep.subr.bf16.mxu0 0
    %988 = vmatpush1.bf16.msra.mxu0 %v807
    %989 = vmatprep.subr.bf16.mxu0 0
    %990 = vmatpush1.bf16.msra.mxu0 %v804
    %991 = vmatprep.subr.bf16.mxu0 0
    %992 = vmatpush1.bf16.msra.mxu0 %v801
    %993 = vmatprep.subr.bf16.mxu0 0
    %994 = vmatpush1.bf16.msra.mxu0 %v798
    %995 = vmatprep.subr.bf16.mxu0 0
    %996 = vmatpush1.bf16.msra.mxu0 %v795
    %997 = vmatprep.subr.bf16.mxu0 0
    %998 = vmatpush1.bf16.msra.mxu0 %v792
    %999 = vmatprep.subr.bf16.mxu0 0
    %1000 = vmatpush2.bf16.msra.mxu0 0
    %1001 = vmatprep.subr.bf16.mxu0 0
    %1002 = vmatpush2.bf16.msra.mxu0 0
    %1003 = vmatprep.subr.bf16.mxu0 0
    %1004 = vmatpush2.bf16.msra.mxu0 0
    %1005 = vmatprep.subr.bf16.mxu0 0
    %1006 = vmatpush2.bf16.msra.mxu0 0
    %1007 = vmatprep.subr.bf16.mxu0 0
    %1008 = vmatpush2.bf16.msra.mxu0 0
    %1009 = vmatprep.subr.bf16.mxu0 0
    %1010 = vmatpush2.bf16.msra.mxu0 0
    %1011 = vmatprep.subr.bf16.mxu0 0
    %1012 = vmatpush2.bf16.msra.mxu0 0
    %1013 = vmatprep.subr.bf16.mxu0 0
    %1014 = vmatpush2.bf16.msra.mxu0 0
    %1015 = vmatprep.mubr.bf16.mxu0 0
    %1016 = vmatmul.mubr.bf16.gmra.mxu0 %v941
    %v1017 = vpop.f32.mrf.mxu0
    %v1018 = vadd.f32 0.0, %v1017
    %v1019 = vpop.f32.mrf.mxu0
    %v1020 = vpop.f32.mrf.mxu0
    %v1021 = vpop.f32.mrf.mxu0
    %1022 = vdwg.mxu0
    %v1023 = vadd.f32 %v572, %v977
    %v1024 = vxor.u32 %v1023, 2147483648
    %v1025 = vmul.f32 %v1024, 1.442695
    %v1026 = vpow.pop %v1025
    %v1027 = vadd.f32 %v1026, 1.0
    %v1028 = vrcp.pop %v1027
    %v1029 = vmul.f32 1.0, %v1028
    %v1030 = vadd.f32 %v574, %v979
    %v1031 = vxor.u32 %v1030, 2147483648
    %v1032 = vmul.f32 %v1031, 1.442695
    %v1033 = vpow.pop %v1032
    %v1034 = vadd.f32 %v1033, 1.0
    %v1035 = vrcp.pop %v1034
    %v1036 = vmul.f32 1.0, %v1035
    %v1037 = vadd.f32 %v1018, %v708
    %v1038 = vmul.f32 %v1029, %v1037
    %v1039 = vadd.f32 %v644, %v1038
    %v1040 = vtanh.pop %v1039
    %v1041 = vsub.f32 1.0, %v1036
    %v1042 = vmul.f32 %v1041, %v1040
    %v1043 = vmul.f32 %v1036, %v940
    %v1044 = vadd.f32 %v1042, %v1043
    %v1045 = vpack.c.bf16 %v1044, %v1044
    %1046 = vmatprep.subr.bf16.mxu0 %v812
    %1047 = vmatpush1.bf16.msra.mxu0 %v811
    %1048 = vmatprep.subr.bf16.mxu0 %v809
    %1049 = vmatpush1.bf16.msra.mxu0 %v808
    %1050 = vmatprep.subr.bf16.mxu0 %v806
    %1051 = vmatpush1.bf16.msra.mxu0 %v805
    %1052 = vmatprep.subr.bf16.mxu0 %v803
    %1053 = vmatpush1.bf16.msra.mxu0 %v802
    %1054 = vmatprep.subr.bf16.mxu0 %v800
    %1055 = vmatpush1.bf16.msra.mxu0 %v799
    %1056 = vmatprep.subr.bf16.mxu0 %v797
    %1057 = vmatpush1.bf16.msra.mxu0 %v796
    %1058 = vmatprep.subr.bf16.mxu0 %v794
    %1059 = vmatpush1.bf16.msra.mxu0 %v793
    %1060 = vmatprep.subr.bf16.mxu0 %v791
    %1061 = vmatpush1.bf16.msra.mxu0 %v790
    %1062 = vmatprep.subr.bf16.mxu0 0
    %1063 = vmatpush2.bf16.msra.mxu0 0
    %1064 = vmatprep.subr.bf16.mxu0 0
    %1065 = vmatpush2.bf16.msra.mxu0 0
    %1066 = vmatprep.subr.bf16.mxu0 0
    %1067 = vmatpush2.bf16.msra.mxu0 0
    %1068 = vmatprep.subr.bf16.mxu0 0
    %1069 = vmatpush2.bf16.msra.mxu0 0
    %1070 = vmatprep.subr.bf16.mxu0 0
    %1071 = vmatpush2.bf16.msra.mxu0 0
    %1072 = vmatprep.subr.bf16.mxu0 0
    %1073 = vmatpush2.bf16.msra.mxu0 0
    %1074 = vmatprep.subr.bf16.mxu0 0
    %1075 = vmatpush2.bf16.msra.mxu0 0
    %1076 = vmatprep.subr.bf16.mxu0 0
    %1077 = vmatpush2.bf16.msra.mxu0 0
    %1078 = vmatprep.mubr.bf16.mxu0 0
    %1079 = vmatmul.mubr.bf16.gmra.mxu0 %v1045
    %v1080 = vpop.f32.mrf.mxu0
    %v1081 = vadd.f32 0.0, %v1080
    %v1082 = vpop.f32.mrf.mxu0
    %v1083 = vadd.f32 0.0, %v1082
    %v1084 = vpop.f32.mrf.mxu0
    %v1085 = vpop.f32.mrf.mxu0
    %1086 = vdwg.mxu0
    %1087 = vmatprep.subr.bf16.mxu0 0
    %1088 = vmatpush1.bf16.msra.mxu0 %v813
    %1089 = vmatprep.subr.bf16.mxu0 0
    %1090 = vmatpush1.bf16.msra.mxu0 %v810
    %1091 = vmatprep.subr.bf16.mxu0 0
    %1092 = vmatpush1.bf16.msra.mxu0 %v807
    %1093 = vmatprep.subr.bf16.mxu0 0
    %1094 = vmatpush1.bf16.msra.mxu0 %v804
    %1095 = vmatprep.subr.bf16.mxu0 0
    %1096 = vmatpush1.bf16.msra.mxu0 %v801
    %1097 = vmatprep.subr.bf16.mxu0 0
    %1098 = vmatpush1.bf16.msra.mxu0 %v798
    %1099 = vmatprep.subr.bf16.mxu0 0
    %1100 = vmatpush1.bf16.msra.mxu0 %v795
    %1101 = vmatprep.subr.bf16.mxu0 0
    %1102 = vmatpush1.bf16.msra.mxu0 %v792
    %1103 = vmatprep.subr.bf16.mxu0 0
    %1104 = vmatpush2.bf16.msra.mxu0 0
    %1105 = vmatprep.subr.bf16.mxu0 0
    %1106 = vmatpush2.bf16.msra.mxu0 0
    %1107 = vmatprep.subr.bf16.mxu0 0
    %1108 = vmatpush2.bf16.msra.mxu0 0
    %1109 = vmatprep.subr.bf16.mxu0 0
    %1110 = vmatpush2.bf16.msra.mxu0 0
    %1111 = vmatprep.subr.bf16.mxu0 0
    %1112 = vmatpush2.bf16.msra.mxu0 0
    %1113 = vmatprep.subr.bf16.mxu0 0
    %1114 = vmatpush2.bf16.msra.mxu0 0
    %1115 = vmatprep.subr.bf16.mxu0 0
    %1116 = vmatpush2.bf16.msra.mxu0 0
    %1117 = vmatprep.subr.bf16.mxu0 0
    %1118 = vmatpush2.bf16.msra.mxu0 0
    %1119 = vmatprep.mubr.bf16.mxu0 0
    %1120 = vmatmul.mubr.bf16.gmra.mxu0 %v1045
    %v1121 = vpop.f32.mrf.mxu0
    %v1122 = vadd.f32 0.0, %v1121
    %v1123 = vpop.f32.mrf.mxu0
    %v1124 = vpop.f32.mrf.mxu0
    %v1125 = vpop.f32.mrf.mxu0
    %1126 = vdwg.mxu0
    %v1127 = vadd.f32 %v578, %v1081
    %v1128 = vxor.u32 %v1127, 2147483648
    %v1129 = vmul.f32 %v1128, 1.442695
    %v1130 = vpow.pop %v1129
    %v1131 = vadd.f32 %v1130, 1.0
    %v1132 = vrcp.pop %v1131
    %v1133 = vmul.f32 1.0, %v1132
    %v1134 = vadd.f32 %v580, %v1083
    %v1135 = vxor.u32 %v1134, 2147483648
    %v1136 = vmul.f32 %v1135, 1.442695
    %v1137 = vpow.pop %v1136
    %v1138 = vadd.f32 %v1137, 1.0
    %v1139 = vrcp.pop %v1138
    %v1140 = vmul.f32 1.0, %v1139
    %v1141 = vadd.f32 %v1122, %v708
    %v1142 = vmul.f32 %v1133, %v1141
    %v1143 = vadd.f32 %v649, %v1142
    %v1144 = vtanh.pop %v1143
    %v1145 = vsub.f32 1.0, %v1140
    %v1146 = vmul.f32 %v1145, %v1144
    %v1147 = vmul.f32 %v1140, %v1044
    %v1148 = vadd.f32 %v1146, %v1147
    %v1149 = vpack.c.bf16 %v1148, %v1148
    %1150 = vmatprep.subr.bf16.mxu0 %v812
    %1151 = vmatpush1.bf16.msra.mxu0 %v811
    %1152 = vmatprep.subr.bf16.mxu0 %v809
    %1153 = vmatpush1.bf16.msra.mxu0 %v808
    %1154 = vmatprep.subr.bf16.mxu0 %v806
    %1155 = vmatpush1.bf16.msra.mxu0 %v805
    %1156 = vmatprep.subr.bf16.mxu0 %v803
    %1157 = vmatpush1.bf16.msra.mxu0 %v802
    %1158 = vmatprep.subr.bf16.mxu0 %v800
    %1159 = vmatpush1.bf16.msra.mxu0 %v799
    %1160 = vmatprep.subr.bf16.mxu0 %v797
    %1161 = vmatpush1.bf16.msra.mxu0 %v796
    %1162 = vmatprep.subr.bf16.mxu0 %v794
    %1163 = vmatpush1.bf16.msra.mxu0 %v793
    %1164 = vmatprep.subr.bf16.mxu0 %v791
    %1165 = vmatpush1.bf16.msra.mxu0 %v790
    %1166 = vmatprep.subr.bf16.mxu0 0
    %1167 = vmatpush2.bf16.msra.mxu0 0
    %1168 = vmatprep.subr.bf16.mxu0 0
    %1169 = vmatpush2.bf16.msra.mxu0 0
    %1170 = vmatprep.subr.bf16.mxu0 0
    %1171 = vmatpush2.bf16.msra.mxu0 0
    %1172 = vmatprep.subr.bf16.mxu0 0
    %1173 = vmatpush2.bf16.msra.mxu0 0
    %1174 = vmatprep.subr.bf16.mxu0 0
    %1175 = vmatpush2.bf16.msra.mxu0 0
    %1176 = vmatprep.subr.bf16.mxu0 0
    %1177 = vmatpush2.bf16.msra.mxu0 0
    %1178 = vmatprep.subr.bf16.mxu0 0
    %1179 = vmatpush2.bf16.msra.mxu0 0
    %1180 = vmatprep.subr.bf16.mxu0 0
    %1181 = vmatpush2.bf16.msra.mxu0 0
    %1182 = vmatprep.mubr.bf16.mxu0 0
    %1183 = vmatmul.mubr.bf16.gmra.mxu0 %v1149
    %v1184 = vpop.f32.mrf.mxu0
    %v1185 = vadd.f32 0.0, %v1184
    %v1186 = vpop.f32.mrf.mxu0
    %v1187 = vadd.f32 0.0, %v1186
    %v1188 = vpop.f32.mrf.mxu0
    %v1189 = vpop.f32.mrf.mxu0
    %1190 = vdwg.mxu0
    %1191 = vmatprep.subr.bf16.mxu0 0
    %1192 = vmatpush1.bf16.msra.mxu0 %v813
    %1193 = vmatprep.subr.bf16.mxu0 0
    %1194 = vmatpush1.bf16.msra.mxu0 %v810
    %1195 = vmatprep.subr.bf16.mxu0 0
    %1196 = vmatpush1.bf16.msra.mxu0 %v807
    %1197 = vmatprep.subr.bf16.mxu0 0
    %1198 = vmatpush1.bf16.msra.mxu0 %v804
    %1199 = vmatprep.subr.bf16.mxu0 0
    %1200 = vmatpush1.bf16.msra.mxu0 %v801
    %1201 = vmatprep.subr.bf16.mxu0 0
    %1202 = vmatpush1.bf16.msra.mxu0 %v798
    %1203 = vmatprep.subr.bf16.mxu0 0
    %1204 = vmatpush1.bf16.msra.mxu0 %v795
    %1205 = vmatprep.subr.bf16.mxu0 0
    %1206 = vmatpush1.bf16.msra.mxu0 %v792
    %1207 = vmatprep.subr.bf16.mxu0 0
    %1208 = vmatpush2.bf16.msra.mxu0 0
    %1209 = vmatprep.subr.bf16.mxu0 0
    %1210 = vmatpush2.bf16.msra.mxu0 0
    %1211 = vmatprep.subr.bf16.mxu0 0
    %1212 = vmatpush2.bf16.msra.mxu0 0
    %1213 = vmatprep.subr.bf16.mxu0 0
    %1214 = vmatpush2.bf16.msra.mxu0 0
    %1215 = vmatprep.subr.bf16.mxu0 0
    %1216 = vmatpush2.bf16.msra.mxu0 0
    %1217 = vmatprep.subr.bf16.mxu0 0
    %1218 = vmatpush2.bf16.msra.mxu0 0
    %1219 = vmatprep.subr.bf16.mxu0 0
    %1220 = vmatpush2.bf16.msra.mxu0 0
    %1221 = vmatprep.subr.bf16.mxu0 0
    %1222 = vmatpush2.bf16.msra.mxu0 0
    %1223 = vmatprep.mubr.bf16.mxu0 0
    %1224 = vmatmul.mubr.bf16.gmra.mxu0 %v1149
    %v1225 = vpop.f32.mrf.mxu0
    %v1226 = vadd.f32 0.0, %v1225
    %v1227 = vpop.f32.mrf.mxu0
    %v1228 = vpop.f32.mrf.mxu0
    %v1229 = vpop.f32.mrf.mxu0
    %1230 = vdwg.mxu0
    %v1231 = vadd.f32 %v582, %v1185
    %v1232 = vxor.u32 %v1231, 2147483648
    %v1233 = vmul.f32 %v1232, 1.442695
    %v1234 = vpow.pop %v1233
    %v1235 = vadd.f32 %v1234, 1.0
    %v1236 = vrcp.pop %v1235
    %v1237 = vmul.f32 1.0, %v1236
    %v1238 = vadd.f32 %v584, %v1187
    %v1239 = vxor.u32 %v1238, 2147483648
    %v1240 = vmul.f32 %v1239, 1.442695
    %v1241 = vpow.pop %v1240
    %v1242 = vadd.f32 %v1241, 1.0
    %v1243 = vrcp.pop %v1242
    %v1244 = vmul.f32 1.0, %v1243
    %v1245 = vadd.f32 %v1226, %v708
    %v1246 = vmul.f32 %v1237, %v1245
    %v1247 = vadd.f32 %v652, %v1246
    %v1248 = vtanh.pop %v1247
    %v1249 = vsub.f32 1.0, %v1244
    %v1250 = vmul.f32 %v1249, %v1248
    %v1251 = vmul.f32 %v1244, %v1148
    %v1252 = vadd.f32 %v1250, %v1251
    %v1253 = vpack.c.bf16 %v1252, %v1252
    %1254 = vmatprep.subr.bf16.mxu0 %v812
    %1255 = vmatpush1.bf16.msra.mxu0 %v811
    %1256 = vmatprep.subr.bf16.mxu0 %v809
    %1257 = vmatpush1.bf16.msra.mxu0 %v808
    %1258 = vmatprep.subr.bf16.mxu0 %v806
    %1259 = vmatpush1.bf16.msra.mxu0 %v805
    %1260 = vmatprep.subr.bf16.mxu0 %v803
    %1261 = vmatpush1.bf16.msra.mxu0 %v802
    %1262 = vmatprep.subr.bf16.mxu0 %v800
    %1263 = vmatpush1.bf16.msra.mxu0 %v799
    %1264 = vmatprep.subr.bf16.mxu0 %v797
    %1265 = vmatpush1.bf16.msra.mxu0 %v796
    %1266 = vmatprep.subr.bf16.mxu0 %v794
    %1267 = vmatpush1.bf16.msra.mxu0 %v793
    %1268 = vmatprep.subr.bf16.mxu0 %v791
    %1269 = vmatpush1.bf16.msra.mxu0 %v790
    %1270 = vmatprep.subr.bf16.mxu0 0
    %1271 = vmatpush2.bf16.msra.mxu0 0
    %1272 = vmatprep.subr.bf16.mxu0 0
    %1273 = vmatpush2.bf16.msra.mxu0 0
    %1274 = vmatprep.subr.bf16.mxu0 0
    %1275 = vmatpush2.bf16.msra.mxu0 0
    %1276 = vmatprep.subr.bf16.mxu0 0
    %1277 = vmatpush2.bf16.msra.mxu0 0
    %1278 = vmatprep.subr.bf16.mxu0 0
    %1279 = vmatpush2.bf16.msra.mxu0 0
    %1280 = vmatprep.subr.bf16.mxu0 0
    %1281 = vmatpush2.bf16.msra.mxu0 0
    %1282 = vmatprep.subr.bf16.mxu0 0
    %1283 = vmatpush2.bf16.msra.mxu0 0
    %1284 = vmatprep.subr.bf16.mxu0 0
    %1285 = vmatpush2.bf16.msra.mxu0 0
    %1286 = vmatprep.mubr.bf16.mxu0 0
    %1287 = vmatmul.mubr.bf16.gmra.mxu0 %v1253
    %v1288 = vpop.f32.mrf.mxu0
    %v1289 = vadd.f32 0.0, %v1288
    %v1290 = vpop.f32.mrf.mxu0
    %v1291 = vadd.f32 0.0, %v1290
    %v1292 = vpop.f32.mrf.mxu0
    %v1293 = vpop.f32.mrf.mxu0
    %1294 = vdwg.mxu0
    %1295 = vmatprep.subr.bf16.mxu0 0
    %1296 = vmatpush1.bf16.msra.mxu0 %v813
    %1297 = vmatprep.subr.bf16.mxu0 0
    %1298 = vmatpush1.bf16.msra.mxu0 %v810
    %1299 = vmatprep.subr.bf16.mxu0 0
    %1300 = vmatpush1.bf16.msra.mxu0 %v807
    %1301 = vmatprep.subr.bf16.mxu0 0
    %1302 = vmatpush1.bf16.msra.mxu0 %v804
    %1303 = vmatprep.subr.bf16.mxu0 0
    %1304 = vmatpush1.bf16.msra.mxu0 %v801
    %1305 = vmatprep.subr.bf16.mxu0 0
    %1306 = vmatpush1.bf16.msra.mxu0 %v798
    %1307 = vmatprep.subr.bf16.mxu0 0
    %1308 = vmatpush1.bf16.msra.mxu0 %v795
    %1309 = vmatprep.subr.bf16.mxu0 0
    %1310 = vmatpush1.bf16.msra.mxu0 %v792
    %1311 = vmatprep.subr.bf16.mxu0 0
    %1312 = vmatpush2.bf16.msra.mxu0 0
    %1313 = vmatprep.subr.bf16.mxu0 0
    %1314 = vmatpush2.bf16.msra.mxu0 0
    %1315 = vmatprep.subr.bf16.mxu0 0
    %1316 = vmatpush2.bf16.msra.mxu0 0
    %1317 = vmatprep.subr.bf16.mxu0 0
    %1318 = vmatpush2.bf16.msra.mxu0 0
    %1319 = vmatprep.subr.bf16.mxu0 0
    %1320 = vmatpush2.bf16.msra.mxu0 0
    %1321 = vmatprep.subr.bf16.mxu0 0
    %1322 = vmatpush2.bf16.msra.mxu0 0
    %1323 = vmatprep.subr.bf16.mxu0 0
    %1324 = vmatpush2.bf16.msra.mxu0 0
    %1325 = vmatprep.subr.bf16.mxu0 0
    %1326 = vmatpush2.bf16.msra.mxu0 0
    %1327 = vmatprep.mubr.bf16.mxu0 0
    %1328 = vmatmul.mubr.bf16.gmra.mxu0 %v1253
    %v1329 = vpop.f32.mrf.mxu0
    %v1330 = vadd.f32 0.0, %v1329
    %v1331 = vpop.f32.mrf.mxu0
    %v1332 = vpop.f32.mrf.mxu0
    %v1333 = vpop.f32.mrf.mxu0
    %1334 = vdwg.mxu0
    %v1335 = vadd.f32 %v588, %v1289
    %v1336 = vxor.u32 %v1335, 2147483648
    %v1337 = vmul.f32 %v1336, 1.442695
    %v1338 = vpow.pop %v1337
    %v1339 = vadd.f32 %v1338, 1.0
    %v1340 = vrcp.pop %v1339
    %v1341 = vmul.f32 1.0, %v1340
    %v1342 = vadd.f32 %v590, %v1291
    %v1343 = vxor.u32 %v1342, 2147483648
    %v1344 = vmul.f32 %v1343, 1.442695
    %v1345 = vpow.pop %v1344
    %v1346 = vadd.f32 %v1345, 1.0
    %v1347 = vrcp.pop %v1346
    %v1348 = vmul.f32 1.0, %v1347
    %v1349 = vadd.f32 %v1330, %v708
    %v1350 = vmul.f32 %v1341, %v1349
    %v1351 = vadd.f32 %v657, %v1350
    %v1352 = vtanh.pop %v1351
    %v1353 = vsub.f32 1.0, %v1348
    %v1354 = vmul.f32 %v1353, %v1352
    %v1355 = vmul.f32 %v1348, %v1252
    %v1356 = vadd.f32 %v1354, %v1355
    %v1357 = vpack.c.bf16 %v1356, %v1356
    %1358 = vmatprep.subr.bf16.mxu0 %v812
    %1359 = vmatpush1.bf16.msra.mxu0 %v811
    %1360 = vmatprep.subr.bf16.mxu0 %v809
    %1361 = vmatpush1.bf16.msra.mxu0 %v808
    %1362 = vmatprep.subr.bf16.mxu0 %v806
    %1363 = vmatpush1.bf16.msra.mxu0 %v805
    %1364 = vmatprep.subr.bf16.mxu0 %v803
    %1365 = vmatpush1.bf16.msra.mxu0 %v802
    %1366 = vmatprep.subr.bf16.mxu0 %v800
    %1367 = vmatpush1.bf16.msra.mxu0 %v799
    %1368 = vmatprep.subr.bf16.mxu0 %v797
    %1369 = vmatpush1.bf16.msra.mxu0 %v796
    %1370 = vmatprep.subr.bf16.mxu0 %v794
    %1371 = vmatpush1.bf16.msra.mxu0 %v793
    %1372 = vmatprep.subr.bf16.mxu0 %v791
    %1373 = vmatpush1.bf16.msra.mxu0 %v790
    %1374 = vmatprep.subr.bf16.mxu0 0
    %1375 = vmatpush2.bf16.msra.mxu0 0
    %1376 = vmatprep.subr.bf16.mxu0 0
    %1377 = vmatpush2.bf16.msra.mxu0 0
    %1378 = vmatprep.subr.bf16.mxu0 0
    %1379 = vmatpush2.bf16.msra.mxu0 0
    %1380 = vmatprep.subr.bf16.mxu0 0
    %1381 = vmatpush2.bf16.msra.mxu0 0
    %1382 = vmatprep.subr.bf16.mxu0 0
    %1383 = vmatpush2.bf16.msra.mxu0 0
    %1384 = vmatprep.subr.bf16.mxu0 0
    %1385 = vmatpush2.bf16.msra.mxu0 0
    %1386 = vmatprep.subr.bf16.mxu0 0
    %1387 = vmatpush2.bf16.msra.mxu0 0
    %1388 = vmatprep.subr.bf16.mxu0 0
    %1389 = vmatpush2.bf16.msra.mxu0 0
    %1390 = vmatprep.mubr.bf16.mxu0 0
    %1391 = vmatmul.mubr.bf16.gmra.mxu0 %v1357
    %v1392 = vpop.f32.mrf.mxu0
    %v1393 = vadd.f32 0.0, %v1392
    %v1394 = vpop.f32.mrf.mxu0
    %v1395 = vadd.f32 0.0, %v1394
    %v1396 = vpop.f32.mrf.mxu0
    %v1397 = vpop.f32.mrf.mxu0
    %1398 = vdwg.mxu0
    %1399 = vmatprep.subr.bf16.mxu0 0
    %1400 = vmatpush1.bf16.msra.mxu0 %v813
    %1401 = vmatprep.subr.bf16.mxu0 0
    %1402 = vmatpush1.bf16.msra.mxu0 %v810
    %1403 = vmatprep.subr.bf16.mxu0 0
    %1404 = vmatpush1.bf16.msra.mxu0 %v807
    %1405 = vmatprep.subr.bf16.mxu0 0
    %1406 = vmatpush1.bf16.msra.mxu0 %v804
    %1407 = vmatprep.subr.bf16.mxu0 0
    %1408 = vmatpush1.bf16.msra.mxu0 %v801
    %1409 = vmatprep.subr.bf16.mxu0 0
    %1410 = vmatpush1.bf16.msra.mxu0 %v798
    %1411 = vmatprep.subr.bf16.mxu0 0
    %1412 = vmatpush1.bf16.msra.mxu0 %v795
    %1413 = vmatprep.subr.bf16.mxu0 0
    %1414 = vmatpush1.bf16.msra.mxu0 %v792
    %1415 = vmatprep.subr.bf16.mxu0 0
    %1416 = vmatpush2.bf16.msra.mxu0 0
    %1417 = vmatprep.subr.bf16.mxu0 0
    %1418 = vmatpush2.bf16.msra.mxu0 0
    %1419 = vmatprep.subr.bf16.mxu0 0
    %1420 = vmatpush2.bf16.msra.mxu0 0
    %1421 = vmatprep.subr.bf16.mxu0 0
    %1422 = vmatpush2.bf16.msra.mxu0 0
    %1423 = vmatprep.subr.bf16.mxu0 0
    %1424 = vmatpush2.bf16.msra.mxu0 0
    %1425 = vmatprep.subr.bf16.mxu0 0
    %1426 = vmatpush2.bf16.msra.mxu0 0
    %1427 = vmatprep.subr.bf16.mxu0 0
    %1428 = vmatpush2.bf16.msra.mxu0 0
    %1429 = vmatprep.subr.bf16.mxu0 0
    %1430 = vmatpush2.bf16.msra.mxu0 0
    %1431 = vmatprep.mubr.bf16.mxu0 0
    %1432 = vmatmul.mubr.bf16.gmra.mxu0 %v1357
    %v1433 = vpop.f32.mrf.mxu0
    %v1434 = vadd.f32 0.0, %v1433
    %v1435 = vpop.f32.mrf.mxu0
    %v1436 = vpop.f32.mrf.mxu0
    %v1437 = vpop.f32.mrf.mxu0
    %1438 = vdwg.mxu0
    %v1439 = vadd.f32 %v592, %v1393
    %v1440 = vxor.u32 %v1439, 2147483648
    %v1441 = vmul.f32 %v1440, 1.442695
    %v1442 = vpow.pop %v1441
    %v1443 = vadd.f32 %v1442, 1.0
    %v1444 = vrcp.pop %v1443
    %v1445 = vmul.f32 1.0, %v1444
    %v1446 = vadd.f32 %v594, %v1395
    %v1447 = vxor.u32 %v1446, 2147483648
    %v1448 = vmul.f32 %v1447, 1.442695
    %v1449 = vpow.pop %v1448
    %v1450 = vadd.f32 %v1449, 1.0
    %v1451 = vrcp.pop %v1450
    %v1452 = vmul.f32 1.0, %v1451
    %v1453 = vadd.f32 %v1434, %v708
    %v1454 = vmul.f32 %v1445, %v1453
    %v1455 = vadd.f32 %v660, %v1454
    %v1456 = vtanh.pop %v1455
    %v1457 = vsub.f32 1.0, %v1452
    %v1458 = vmul.f32 %v1457, %v1456
    %v1459 = vmul.f32 %v1452, %v1356
    %v1460 = vadd.f32 %v1458, %v1459
    %v1461 = vpack.c.bf16 %v1460, %v1460
    %1462 = vmatprep.subr.bf16.mxu0 %v812
    %1463 = vmatpush1.bf16.msra.mxu0 %v811
    %1464 = vmatprep.subr.bf16.mxu0 %v809
    %1465 = vmatpush1.bf16.msra.mxu0 %v808
    %1466 = vmatprep.subr.bf16.mxu0 %v806
    %1467 = vmatpush1.bf16.msra.mxu0 %v805
    %1468 = vmatprep.subr.bf16.mxu0 %v803
    %1469 = vmatpush1.bf16.msra.mxu0 %v802
    %1470 = vmatprep.subr.bf16.mxu0 %v800
    %1471 = vmatpush1.bf16.msra.mxu0 %v799
    %1472 = vmatprep.subr.bf16.mxu0 %v797
    %1473 = vmatpush1.bf16.msra.mxu0 %v796
    %1474 = vmatprep.subr.bf16.mxu0 %v794
    %1475 = vmatpush1.bf16.msra.mxu0 %v793
    %1476 = vmatprep.subr.bf16.mxu0 %v791
    %1477 = vmatpush1.bf16.msra.mxu0 %v790
    %1478 = vmatprep.subr.bf16.mxu0 0
    %1479 = vmatpush2.bf16.msra.mxu0 0
    %1480 = vmatprep.subr.bf16.mxu0 0
    %1481 = vmatpush2.bf16.msra.mxu0 0
    %1482 = vmatprep.subr.bf16.mxu0 0
    %1483 = vmatpush2.bf16.msra.mxu0 0
    %1484 = vmatprep.subr.bf16.mxu0 0
    %1485 = vmatpush2.bf16.msra.mxu0 0
    %1486 = vmatprep.subr.bf16.mxu0 0
    %1487 = vmatpush2.bf16.msra.mxu0 0
    %1488 = vmatprep.subr.bf16.mxu0 0
    %1489 = vmatpush2.bf16.msra.mxu0 0
    %1490 = vmatprep.subr.bf16.mxu0 0
    %1491 = vmatpush2.bf16.msra.mxu0 0
    %1492 = vmatprep.subr.bf16.mxu0 0
    %1493 = vmatpush2.bf16.msra.mxu0 0
    %1494 = vmatprep.mubr.bf16.mxu0 0
    %1495 = vmatmul.mubr.bf16.gmra.mxu0 %v1461
    %v1496 = vpop.f32.mrf.mxu0
    %v1497 = vadd.f32 0.0, %v1496
    %v1498 = vpop.f32.mrf.mxu0
    %v1499 = vadd.f32 0.0, %v1498
    %v1500 = vpop.f32.mrf.mxu0
    %v1501 = vpop.f32.mrf.mxu0
    %1502 = vdwg.mxu0
    %1503 = vmatprep.subr.bf16.mxu0 0
    %1504 = vmatpush1.bf16.msra.mxu0 %v813
    %1505 = vmatprep.subr.bf16.mxu0 0
    %1506 = vmatpush1.bf16.msra.mxu0 %v810
    %1507 = vmatprep.subr.bf16.mxu0 0
    %1508 = vmatpush1.bf16.msra.mxu0 %v807
    %1509 = vmatprep.subr.bf16.mxu0 0
    %1510 = vmatpush1.bf16.msra.mxu0 %v804
    %1511 = vmatprep.subr.bf16.mxu0 0
    %1512 = vmatpush1.bf16.msra.mxu0 %v801
    %1513 = vmatprep.subr.bf16.mxu0 0
    %1514 = vmatpush1.bf16.msra.mxu0 %v798
    %1515 = vmatprep.subr.bf16.mxu0 0
    %1516 = vmatpush1.bf16.msra.mxu0 %v795
    %1517 = vmatprep.subr.bf16.mxu0 0
    %1518 = vmatpush1.bf16.msra.mxu0 %v792
    %1519 = vmatprep.subr.bf16.mxu0 0
    %1520 = vmatpush2.bf16.msra.mxu0 0
    %1521 = vmatprep.subr.bf16.mxu0 0
    %1522 = vmatpush2.bf16.msra.mxu0 0
    %1523 = vmatprep.subr.bf16.mxu0 0
    %1524 = vmatpush2.bf16.msra.mxu0 0
    %1525 = vmatprep.subr.bf16.mxu0 0
    %1526 = vmatpush2.bf16.msra.mxu0 0
    %1527 = vmatprep.subr.bf16.mxu0 0
    %1528 = vmatpush2.bf16.msra.mxu0 0
    %1529 = vmatprep.subr.bf16.mxu0 0
    %1530 = vmatpush2.bf16.msra.mxu0 0
    %1531 = vmatprep.subr.bf16.mxu0 0
    %1532 = vmatpush2.bf16.msra.mxu0 0
    %1533 = vmatprep.subr.bf16.mxu0 0
    %1534 = vmatpush2.bf16.msra.mxu0 0
    %1535 = vmatprep.mubr.bf16.mxu0 0
    %1536 = vmatmul.mubr.bf16.gmra.mxu0 %v1461
    %v1537 = vpop.f32.mrf.mxu0
    %v1538 = vadd.f32 0.0, %v1537
    %v1539 = vpop.f32.mrf.mxu0
    %v1540 = vpop.f32.mrf.mxu0
    %v1541 = vpop.f32.mrf.mxu0
    %1542 = vdwg.mxu0
    %v1543 = vadd.f32 %v598, %v1497
    %v1544 = vxor.u32 %v1543, 2147483648
    %v1545 = vmul.f32 %v1544, 1.442695
    %v1546 = vpow.pop %v1545
    %v1547 = vadd.f32 %v1546, 1.0
    %v1548 = vrcp.pop %v1547
    %v1549 = vmul.f32 1.0, %v1548
    %v1550 = vadd.f32 %v600, %v1499
    %v1551 = vxor.u32 %v1550, 2147483648
    %v1552 = vmul.f32 %v1551, 1.442695
    %v1553 = vpow.pop %v1552
    %v1554 = vadd.f32 %v1553, 1.0
    %v1555 = vrcp.pop %v1554
    %v1556 = vmul.f32 1.0, %v1555
    %v1557 = vadd.f32 %v1538, %v708
    %v1558 = vmul.f32 %v1549, %v1557
    %v1559 = vadd.f32 %v665, %v1558
    %v1560 = vtanh.pop %v1559
    %v1561 = vsub.f32 1.0, %v1556
    %v1562 = vmul.f32 %v1561, %v1560
    %v1563 = vmul.f32 %v1556, %v1460
    %v1564 = vadd.f32 %v1562, %v1563
    %v1565 = vpack.c.bf16 %v1564, %v1564
    %1566 = vmatprep.subr.bf16.mxu0 %v812
    %1567 = vmatpush1.bf16.msra.mxu0 %v811
    %1568 = vmatprep.subr.bf16.mxu0 %v809
    %1569 = vmatpush1.bf16.msra.mxu0 %v808
    %1570 = vmatprep.subr.bf16.mxu0 %v806
    %1571 = vmatpush1.bf16.msra.mxu0 %v805
    %1572 = vmatprep.subr.bf16.mxu0 %v803
    %1573 = vmatpush1.bf16.msra.mxu0 %v802
    %1574 = vmatprep.subr.bf16.mxu0 %v800
    %1575 = vmatpush1.bf16.msra.mxu0 %v799
    %1576 = vmatprep.subr.bf16.mxu0 %v797
    %1577 = vmatpush1.bf16.msra.mxu0 %v796
    %1578 = vmatprep.subr.bf16.mxu0 %v794
    %1579 = vmatpush1.bf16.msra.mxu0 %v793
    %1580 = vmatprep.subr.bf16.mxu0 %v791
    %1581 = vmatpush1.bf16.msra.mxu0 %v790
    %1582 = vmatprep.subr.bf16.mxu0 0
    %1583 = vmatpush2.bf16.msra.mxu0 0
    %1584 = vmatprep.subr.bf16.mxu0 0
    %1585 = vmatpush2.bf16.msra.mxu0 0
    %1586 = vmatprep.subr.bf16.mxu0 0
    %1587 = vmatpush2.bf16.msra.mxu0 0
    %1588 = vmatprep.subr.bf16.mxu0 0
    %1589 = vmatpush2.bf16.msra.mxu0 0
    %1590 = vmatprep.subr.bf16.mxu0 0
    %1591 = vmatpush2.bf16.msra.mxu0 0
    %1592 = vmatprep.subr.bf16.mxu0 0
    %1593 = vmatpush2.bf16.msra.mxu0 0
    %1594 = vmatprep.subr.bf16.mxu0 0
    %1595 = vmatpush2.bf16.msra.mxu0 0
    %1596 = vmatprep.subr.bf16.mxu0 0
    %1597 = vmatpush2.bf16.msra.mxu0 0
    %1598 = vmatprep.mubr.bf16.mxu0 0
    %1599 = vmatmul.mubr.bf16.gmra.mxu0 %v1565
    %v1600 = vpop.f32.mrf.mxu0
    %v1601 = vadd.f32 0.0, %v1600
    %v1602 = vpop.f32.mrf.mxu0
    %v1603 = vadd.f32 0.0, %v1602
    %v1604 = vpop.f32.mrf.mxu0
    %v1605 = vpop.f32.mrf.mxu0
    %1606 = vdwg.mxu0
    %1607 = vmatprep.subr.bf16.mxu0 0
    %1608 = vmatpush1.bf16.msra.mxu0 %v813
    %1609 = vmatprep.subr.bf16.mxu0 0
    %1610 = vmatpush1.bf16.msra.mxu0 %v810
    %1611 = vmatprep.subr.bf16.mxu0 0
    %1612 = vmatpush1.bf16.msra.mxu0 %v807
    %1613 = vmatprep.subr.bf16.mxu0 0
    %1614 = vmatpush1.bf16.msra.mxu0 %v804
    %1615 = vmatprep.subr.bf16.mxu0 0
    %1616 = vmatpush1.bf16.msra.mxu0 %v801
    %1617 = vmatprep.subr.bf16.mxu0 0
    %1618 = vmatpush1.bf16.msra.mxu0 %v798
    %1619 = vmatprep.subr.bf16.mxu0 0
    %1620 = vmatpush1.bf16.msra.mxu0 %v795
    %1621 = vmatprep.subr.bf16.mxu0 0
    %1622 = vmatpush1.bf16.msra.mxu0 %v792
    %1623 = vmatprep.subr.bf16.mxu0 0
    %1624 = vmatpush2.bf16.msra.mxu0 0
    %1625 = vmatprep.subr.bf16.mxu0 0
    %1626 = vmatpush2.bf16.msra.mxu0 0
    %1627 = vmatprep.subr.bf16.mxu0 0
    %1628 = vmatpush2.bf16.msra.mxu0 0
    %1629 = vmatprep.subr.bf16.mxu0 0
    %1630 = vmatpush2.bf16.msra.mxu0 0
    %1631 = vmatprep.subr.bf16.mxu0 0
    %1632 = vmatpush2.bf16.msra.mxu0 0
    %1633 = vmatprep.subr.bf16.mxu0 0
    %1634 = vmatpush2.bf16.msra.mxu0 0
    %1635 = vmatprep.subr.bf16.mxu0 0
    %1636 = vmatpush2.bf16.msra.mxu0 0
    %1637 = vmatprep.subr.bf16.mxu0 0
    %1638 = vmatpush2.bf16.msra.mxu0 0
    %1639 = vmatprep.mubr.bf16.mxu0 0
    %1640 = vmatmul.mubr.bf16.gmra.mxu0 %v1565
    %v1641 = vpop.f32.mrf.mxu0
    %v1642 = vadd.f32 0.0, %v1641
    %v1643 = vpop.f32.mrf.mxu0
    %v1644 = vpop.f32.mrf.mxu0
    %v1645 = vpop.f32.mrf.mxu0
    %1646 = vdwg.mxu0
    %v1647 = vadd.f32 %v602, %v1601
    %v1648 = vxor.u32 %v1647, 2147483648
    %v1649 = vmul.f32 %v1648, 1.442695
    %v1650 = vpow.pop %v1649
    %v1651 = vadd.f32 %v1650, 1.0
    %v1652 = vrcp.pop %v1651
    %v1653 = vmul.f32 1.0, %v1652
    %v1654 = vadd.f32 %v604, %v1603
    %v1655 = vxor.u32 %v1654, 2147483648
    %v1656 = vmul.f32 %v1655, 1.442695
    %v1657 = vpow.pop %v1656
    %v1658 = vadd.f32 %v1657, 1.0
    %v1659 = vrcp.pop %v1658
    %v1660 = vmul.f32 1.0, %v1659
    %v1661 = vadd.f32 %v1642, %v708
    %v1662 = vmul.f32 %v1653, %v1661
    %v1663 = vadd.f32 %v668, %v1662
    %v1664 = vtanh.pop %v1663
    %v1665 = vsub.f32 1.0, %v1660
    %v1666 = vmul.f32 %v1665, %v1664
    %v1667 = vmul.f32 %v1660, %v1564
    %v1668 = vadd.f32 %v1666, %v1667
    %v1669 = vld [vmem:[#allocation10] sm:$0xf]
    %v1670 = vld [vmem:[#allocation10 + $0x4] sm:$0xf]
    %v1671 = vld [vmem:[#allocation10 + $0x8] sm:$0xf]
    %v1672 = vld [vmem:[#allocation10 + $0xc] sm:$0xf]
    %v1673 = vld [vmem:[#allocation10 + $0x10] sm:$0xf]
    %v1674 = vld [vmem:[#allocation10 + $0x14] sm:$0xf]
    %v1675 = vld [vmem:[#allocation10 + $0x18] sm:$0xf]
    %v1676 = vld [vmem:[#allocation10 + $0x1c] sm:$0xf]
    %v1677 = vld [vmem:[#allocation10 + $0x20] sm:$0xf]
    %v1678 = vld [vmem:[#allocation10 + $0x24] sm:$0xf]
    %v1679 = vld [vmem:[#allocation10 + $0x28] sm:$0xf]
    %v1680 = vld [vmem:[#allocation10 + $0x2c] sm:$0xf]
    %v1681 = vld [vmem:[#allocation10 + $0x30] sm:$0xf]
    %v1682 = vld [vmem:[#allocation10 + $0x34] sm:$0xf]
    %v1683 = vld [vmem:[#allocation10 + $0x38] sm:$0xf]
    %v1684 = vld [vmem:[#allocation10 + $0x3c] sm:$0xf]
    %v1685 = vld [vmem:[%s8] sm:$0x1]
    %v1686 = vpack.c.bf16 %v1668, %v1668
    %v1688 = vlaneseq
    %v1689 = vshrl.u32 %v1688, 7
    %v1690 = vsub.s32 0, %v1689
    %v1691 = vrot.slane %v1685, %v1690
    %v1709 = vunpack.c.l.b16 %v1669
    %v1710 = vunpack.c.l.b16 %v1670
    %v1711 = vunpack.c.l.b16 %v1671
    %v1712 = vunpack.c.l.b16 %v1672
    %v1713 = vunpack.c.l.b16 %v1673
    %v1714 = vunpack.c.l.b16 %v1674
    %v1715 = vunpack.c.l.b16 %v1675
    %v1716 = vunpack.c.l.b16 %v1676
    %v1717 = vunpack.c.l.b16 %v1677
    %v1718 = vunpack.c.l.b16 %v1678
    %v1719 = vunpack.c.l.b16 %v1679
    %v1720 = vunpack.c.l.b16 %v1680
    %v1721 = vunpack.c.l.b16 %v1681
    %v1722 = vunpack.c.l.b16 %v1682
    %v1723 = vunpack.c.l.b16 %v1683
    %v1724 = vunpack.c.l.b16 %v1684
    %v1725 = vpack.c.b16 %v1710, %v1709
    %v1726 = vpack.c.b16 %v1712, %v1711
    %v1727 = vpack.c.b16 %v1714, %v1713
    %v1728 = vpack.c.b16 %v1716, %v1715
    %v1729 = vpack.c.b16 %v1718, %v1717
    %v1730 = vpack.c.b16 %v1720, %v1719
    %v1731 = vpack.c.b16 %v1722, %v1721
    %v1732 = vpack.c.b16 %v1724, %v1723
    %1741 = vmatprep.subr.bf16.mxu0 0
    %1742 = vmatpush1.bf16.msra.mxu0 %v1732
    %1743 = vmatprep.subr.bf16.mxu0 0
    %1744 = vmatpush1.bf16.msra.mxu0 %v1731
    %1745 = vmatprep.subr.bf16.mxu0 0
    %1746 = vmatpush1.bf16.msra.mxu0 %v1730
    %1747 = vmatprep.subr.bf16.mxu0 0
    %1748 = vmatpush1.bf16.msra.mxu0 %v1729
    %1749 = vmatprep.subr.bf16.mxu0 0
    %1750 = vmatpush1.bf16.msra.mxu0 %v1728
    %1751 = vmatprep.subr.bf16.mxu0 0
    %1752 = vmatpush1.bf16.msra.mxu0 %v1727
    %1753 = vmatprep.subr.bf16.mxu0 0
    %1754 = vmatpush1.bf16.msra.mxu0 %v1726
    %1755 = vmatprep.subr.bf16.mxu0 0
    %1756 = vmatpush1.bf16.msra.mxu0 %v1725
    %1757 = vmatprep.subr.bf16.mxu0 0
    %1758 = vmatpush2.bf16.msra.mxu0 0
    %1759 = vmatprep.subr.bf16.mxu0 0
    %1760 = vmatpush2.bf16.msra.mxu0 0
    %1761 = vmatprep.subr.bf16.mxu0 0
    %1762 = vmatpush2.bf16.msra.mxu0 0
    %1763 = vmatprep.subr.bf16.mxu0 0
    %1764 = vmatpush2.bf16.msra.mxu0 0
    %1765 = vmatprep.subr.bf16.mxu0 0
    %1766 = vmatpush2.bf16.msra.mxu0 0
    %1767 = vmatprep.subr.bf16.mxu0 0
    %1768 = vmatpush2.bf16.msra.mxu0 0
    %1769 = vmatprep.subr.bf16.mxu0 0
    %1770 = vmatpush2.bf16.msra.mxu0 0
    %1771 = vmatprep.subr.bf16.mxu0 0
    %1772 = vmatpush2.bf16.msra.mxu0 0
    %1773 = vmatprep.mubr.bf16.mxu0 0
    %1774 = vmatmul.mubr.bf16.gmra.mxu0 %v1686
    %v1775 = vpop.f32.mrf.mxu0
    %v1776 = vadd.f32 %v1691, %v1775
    %v1777 = vpop.f32.mrf.mxu0
    %v1778 = vpop.f32.mrf.mxu0
    %v1779 = vpop.f32.mrf.mxu0
    %1780 = vdwg.mxu0
    %v1781 = vmax.f32 %v1776, 0.0
    %v1782 = vld [vmem:[#allocation11] sm:$0xf]
    %v1783 = vld [vmem:[#allocation11 + $0x4] sm:$0xf]
    %v1784 = vld [vmem:[#allocation11 + $0x8] sm:$0xf]
    %v1785 = vld [vmem:[#allocation11 + $0xc] sm:$0xf]
    %v1786 = vld [vmem:[#allocation11 + $0x10] sm:$0xf]
    %v1787 = vld [vmem:[#allocation11 + $0x14] sm:$0xf]
    %v1788 = vld [vmem:[#allocation11 + $0x18] sm:$0xf]
    %v1789 = vld [vmem:[#allocation11 + $0x1c] sm:$0xf]
    %v1790 = vld [vmem:[#allocation11 + $0x20] sm:$0xf]
    %v1791 = vld [vmem:[#allocation11 + $0x24] sm:$0xf]
    %v1792 = vld [vmem:[#allocation11 + $0x28] sm:$0xf]
    %v1793 = vld [vmem:[#allocation11 + $0x2c] sm:$0xf]
    %v1794 = vld [vmem:[#allocation11 + $0x30] sm:$0xf]
    %v1795 = vld [vmem:[#allocation11 + $0x34] sm:$0xf]
    %v1796 = vld [vmem:[#allocation11 + $0x38] sm:$0xf]
    %v1797 = vld [vmem:[#allocation11 + $0x3c] sm:$0xf]
    %v1798 = vld [vmem:[%s10] sm:$0x1]
    %v1799 = vpack.c.bf16 %v1781, %v1781
    %v1801 = vlaneseq
    %v1802 = vshrl.u32 %v1801, 7
    %v1803 = vsub.s32 0, %v1802
    %v1804 = vrot.slane %v1798, %v1803
    %v1822 = vunpack.c.l.b16 %v1782
    %v1823 = vunpack.c.l.b16 %v1783
    %v1824 = vunpack.c.l.b16 %v1784
    %v1825 = vunpack.c.l.b16 %v1785
    %v1826 = vunpack.c.l.b16 %v1786
    %v1827 = vunpack.c.l.b16 %v1787
    %v1828 = vunpack.c.l.b16 %v1788
    %v1829 = vunpack.c.l.b16 %v1789
    %v1830 = vunpack.c.l.b16 %v1790
    %v1831 = vunpack.c.l.b16 %v1791
    %v1832 = vunpack.c.l.b16 %v1792
    %v1833 = vunpack.c.l.b16 %v1793
    %v1834 = vunpack.c.l.b16 %v1794
    %v1835 = vunpack.c.l.b16 %v1795
    %v1836 = vunpack.c.l.b16 %v1796
    %v1837 = vunpack.c.l.b16 %v1797
    %v1838 = vpack.c.b16 %v1823, %v1822
    %v1839 = vpack.c.b16 %v1825, %v1824
    %v1840 = vpack.c.b16 %v1827, %v1826
    %v1841 = vpack.c.b16 %v1829, %v1828
    %v1842 = vpack.c.b16 %v1831, %v1830
    %v1843 = vpack.c.b16 %v1833, %v1832
    %v1844 = vpack.c.b16 %v1835, %v1834
    %v1845 = vpack.c.b16 %v1837, %v1836
    %1854 = vmatprep.subr.bf16.mxu0 0
    %1855 = vmatpush1.bf16.msra.mxu0 %v1845
    %1856 = vmatprep.subr.bf16.mxu0 0
    %1857 = vmatpush1.bf16.msra.mxu0 %v1844
    %1858 = vmatprep.subr.bf16.mxu0 0
    %1859 = vmatpush1.bf16.msra.mxu0 %v1843
    %1860 = vmatprep.subr.bf16.mxu0 0
    %1861 = vmatpush1.bf16.msra.mxu0 %v1842
    %1862 = vmatprep.subr.bf16.mxu0 0
    %1863 = vmatpush1.bf16.msra.mxu0 %v1841
    %1864 = vmatprep.subr.bf16.mxu0 0
    %1865 = vmatpush1.bf16.msra.mxu0 %v1840
    %1866 = vmatprep.subr.bf16.mxu0 0
    %1867 = vmatpush1.bf16.msra.mxu0 %v1839
    %1868 = vmatprep.subr.bf16.mxu0 0
    %1869 = vmatpush1.bf16.msra.mxu0 %v1838
    %1870 = vmatprep.subr.bf16.mxu0 0
    %1871 = vmatpush2.bf16.msra.mxu0 0
    %1872 = vmatprep.subr.bf16.mxu0 0
    %1873 = vmatpush2.bf16.msra.mxu0 0
    %1874 = vmatprep.subr.bf16.mxu0 0
    %1875 = vmatpush2.bf16.msra.mxu0 0
    %1876 = vmatprep.subr.bf16.mxu0 0
    %1877 = vmatpush2.bf16.msra.mxu0 0
    %1878 = vmatprep.subr.bf16.mxu0 0
    %1879 = vmatpush2.bf16.msra.mxu0 0
    %1880 = vmatprep.subr.bf16.mxu0 0
    %1881 = vmatpush2.bf16.msra.mxu0 0
    %1882 = vmatprep.subr.bf16.mxu0 0
    %1883 = vmatpush2.bf16.msra.mxu0 0
    %1884 = vmatprep.subr.bf16.mxu0 0
    %1885 = vmatpush2.bf16.msra.mxu0 0
    %1886 = vmatprep.mubr.bf16.mxu0 0
    %1887 = vmatmul.mubr.bf16.gmra.mxu0 %v1799
    %v1888 = vpop.f32.mrf.mxu0
    %v1889 = vadd.f32 %v1804, %v1888
    %v1890 = vpop.f32.mrf.mxu0
    %v1891 = vpop.f32.mrf.mxu0
    %v1892 = vpop.f32.mrf.mxu0
    %1893 = vdwg.mxu0
    %v1894 = vmax.f32 %v1889, 0.0
    %v1895 = vld [vmem:[#allocation13] sm:$0xf]
    %v1896 = vld [vmem:[#allocation13 + $0x4] sm:$0xf]
    %v1897 = vld [vmem:[#allocation13 + $0x8] sm:$0xf]
    %v1898 = vld [vmem:[#allocation13 + $0xc] sm:$0xf]
    %v1899 = vld [vmem:[#allocation13 + $0x10] sm:$0xf]
    %v1900 = vld [vmem:[#allocation13 + $0x14] sm:$0xf]
    %v1901 = vld [vmem:[#allocation13 + $0x18] sm:$0xf]
    %v1902 = vld [vmem:[#allocation13 + $0x1c] sm:$0xf]
    %v1903 = vld [vmem:[#allocation13 + $0x20] sm:$0xf]
    %v1904 = vld [vmem:[#allocation13 + $0x24] sm:$0xf]
    %v1905 = vld [vmem:[#allocation13 + $0x28] sm:$0xf]
    %v1906 = vld [vmem:[#allocation13 + $0x2c] sm:$0xf]
    %v1907 = vld [vmem:[#allocation13 + $0x30] sm:$0xf]
    %v1908 = vld [vmem:[#allocation13 + $0x34] sm:$0xf]
    %v1909 = vld [vmem:[#allocation13 + $0x38] sm:$0xf]
    %v1910 = vld [vmem:[#allocation13 + $0x3c] sm:$0xf]
    %v1911 = vld [vmem:[%s12] sm:$0x1]
    %v1912 = vpack.c.bf16 %v1894, %v1894
    %v1914 = vlaneseq
    %v1915 = vshrl.u32 %v1914, 7
    %v1916 = vsub.s32 0, %v1915
    %v1917 = vrot.slane %v1911, %v1916
    %v1935 = vunpack.c.l.b16 %v1895
    %v1936 = vunpack.c.l.b16 %v1896
    %v1937 = vunpack.c.l.b16 %v1897
    %v1938 = vunpack.c.l.b16 %v1898
    %v1939 = vunpack.c.l.b16 %v1899
    %v1940 = vunpack.c.l.b16 %v1900
    %v1941 = vunpack.c.l.b16 %v1901
    %v1942 = vunpack.c.l.b16 %v1902
    %v1943 = vunpack.c.l.b16 %v1903
    %v1944 = vunpack.c.l.b16 %v1904
    %v1945 = vunpack.c.l.b16 %v1905
    %v1946 = vunpack.c.l.b16 %v1906
    %v1947 = vunpack.c.l.b16 %v1907
    %v1948 = vunpack.c.l.b16 %v1908
    %v1949 = vunpack.c.l.b16 %v1909
    %v1950 = vunpack.c.l.b16 %v1910
    %v1951 = vpack.c.b16 %v1936, %v1935
    %v1952 = vpack.c.b16 %v1938, %v1937
    %v1953 = vpack.c.b16 %v1940, %v1939
    %v1954 = vpack.c.b16 %v1942, %v1941
    %v1955 = vpack.c.b16 %v1944, %v1943
    %v1956 = vpack.c.b16 %v1946, %v1945
    %v1957 = vpack.c.b16 %v1948, %v1947
    %v1958 = vpack.c.b16 %v1950, %v1949
    %1967 = vmatprep.subr.bf16.mxu0 0
    %1968 = vmatpush1.bf16.msra.mxu0 %v1958
    %1969 = vmatprep.subr.bf16.mxu0 0
    %1970 = vmatpush1.bf16.msra.mxu0 %v1957
    %1971 = vmatprep.subr.bf16.mxu0 0
    %1972 = vmatpush1.bf16.msra.mxu0 %v1956
    %1973 = vmatprep.subr.bf16.mxu0 0
    %1974 = vmatpush1.bf16.msra.mxu0 %v1955
    %1975 = vmatprep.subr.bf16.mxu0 0
    %1976 = vmatpush1.bf16.msra.mxu0 %v1954
    %1977 = vmatprep.subr.bf16.mxu0 0
    %1978 = vmatpush1.bf16.msra.mxu0 %v1953
    %1979 = vmatprep.subr.bf16.mxu0 0
    %1980 = vmatpush1.bf16.msra.mxu0 %v1952
    %1981 = vmatprep.subr.bf16.mxu0 0
    %1982 = vmatpush1.bf16.msra.mxu0 %v1951
    %1983 = vmatprep.subr.bf16.mxu0 0
    %1984 = vmatpush2.bf16.msra.mxu0 0
    %1985 = vmatprep.subr.bf16.mxu0 0
    %1986 = vmatpush2.bf16.msra.mxu0 0
    %1987 = vmatprep.subr.bf16.mxu0 0
    %1988 = vmatpush2.bf16.msra.mxu0 0
    %1989 = vmatprep.subr.bf16.mxu0 0
    %1990 = vmatpush2.bf16.msra.mxu0 0
    %1991 = vmatprep.subr.bf16.mxu0 0
    %1992 = vmatpush2.bf16.msra.mxu0 0
    %1993 = vmatprep.subr.bf16.mxu0 0
    %1994 = vmatpush2.bf16.msra.mxu0 0
    %1995 = vmatprep.subr.bf16.mxu0 0
    %1996 = vmatpush2.bf16.msra.mxu0 0
    %1997 = vmatprep.subr.bf16.mxu0 0
    %1998 = vmatpush2.bf16.msra.mxu0 0
    %1999 = vmatprep.mubr.bf16.mxu0 0
    %2000 = vmatmul.mubr.bf16.gmra.mxu0 %v1912
    %v2001 = vpop.f32.mrf.mxu0
    %v2002 = vadd.f32 %v1917, %v2001
    %v2003 = vpop.f32.mrf.mxu0
    %v2004 = vpop.f32.mrf.mxu0
    %v2005 = vpop.f32.mrf.mxu0
    %2006 = vdwg.mxu0
    %v2007 = vmax.f32 %v2002, 0.0
    %v2008 = vld [vmem:[#allocation14] sm:$0xf]
    %v2009 = vld [vmem:[#allocation14 + $0x4] sm:$0xf]
    %v2010 = vld [vmem:[#allocation14 + $0x8] sm:$0xf]
    %v2011 = vld [vmem:[#allocation14 + $0xc] sm:$0xf]
    %v2012 = vld [vmem:[#allocation14 + $0x10] sm:$0xf]
    %v2013 = vld [vmem:[#allocation14 + $0x14] sm:$0xf]
    %v2014 = vld [vmem:[#allocation14 + $0x18] sm:$0xf]
    %v2015 = vld [vmem:[#allocation14 + $0x1c] sm:$0xf]
    %v2016 = vld [vmem:[#allocation14 + $0x20] sm:$0xf]
    %v2017 = vld [vmem:[#allocation14 + $0x24] sm:$0xf]
    %v2018 = vld [vmem:[#allocation14 + $0x28] sm:$0xf]
    %v2019 = vld [vmem:[#allocation14 + $0x2c] sm:$0xf]
    %v2020 = vld [vmem:[#allocation14 + $0x30] sm:$0xf]
    %v2021 = vld [vmem:[#allocation14 + $0x34] sm:$0xf]
    %v2022 = vld [vmem:[#allocation14 + $0x38] sm:$0xf]
    %v2023 = vld [vmem:[#allocation14 + $0x3c] sm:$0xf]
    %v2024 = vld [vmem:[%s14] sm:$0x1]
    %v2025 = vpack.c.bf16 %v2007, %v2007
    %v2027 = vlaneseq
    %v2028 = vshrl.u32 %v2027, 7
    %v2029 = vsub.s32 0, %v2028
    %v2030 = vrot.slane %v2024, %v2029
    %v2048 = vunpack.c.l.b16 %v2008
    %v2049 = vunpack.c.l.b16 %v2009
    %v2050 = vunpack.c.l.b16 %v2010
    %v2051 = vunpack.c.l.b16 %v2011
    %v2052 = vunpack.c.l.b16 %v2012
    %v2053 = vunpack.c.l.b16 %v2013
    %v2054 = vunpack.c.l.b16 %v2014
    %v2055 = vunpack.c.l.b16 %v2015
    %v2056 = vunpack.c.l.b16 %v2016
    %v2057 = vunpack.c.l.b16 %v2017
    %v2058 = vunpack.c.l.b16 %v2018
    %v2059 = vunpack.c.l.b16 %v2019
    %v2060 = vunpack.c.l.b16 %v2020
    %v2061 = vunpack.c.l.b16 %v2021
    %v2062 = vunpack.c.l.b16 %v2022
    %v2063 = vunpack.c.l.b16 %v2023
    %v2064 = vpack.c.b16 %v2049, %v2048
    %v2065 = vpack.c.b16 %v2051, %v2050
    %v2066 = vpack.c.b16 %v2053, %v2052
    %v2067 = vpack.c.b16 %v2055, %v2054
    %v2068 = vpack.c.b16 %v2057, %v2056
    %v2069 = vpack.c.b16 %v2059, %v2058
    %v2070 = vpack.c.b16 %v2061, %v2060
    %v2071 = vpack.c.b16 %v2063, %v2062
    %2080 = vmatprep.subr.bf16.mxu0 0
    %2081 = vmatpush1.bf16.msra.mxu0 %v2071
    %2082 = vmatprep.subr.bf16.mxu0 0
    %2083 = vmatpush1.bf16.msra.mxu0 %v2070
    %2084 = vmatprep.subr.bf16.mxu0 0
    %2085 = vmatpush1.bf16.msra.mxu0 %v2069
    %2086 = vmatprep.subr.bf16.mxu0 0
    %2087 = vmatpush1.bf16.msra.mxu0 %v2068
    %2088 = vmatprep.subr.bf16.mxu0 0
    %2089 = vmatpush1.bf16.msra.mxu0 %v2067
    %2090 = vmatprep.subr.bf16.mxu0 0
    %2091 = vmatpush1.bf16.msra.mxu0 %v2066
    %2092 = vmatprep.subr.bf16.mxu0 0
    %2093 = vmatpush1.bf16.msra.mxu0 %v2065
    %2094 = vmatprep.subr.bf16.mxu0 0
    %2095 = vmatpush1.bf16.msra.mxu0 %v2064
    %2096 = vmatprep.subr.bf16.mxu0 0
    %2097 = vmatpush2.bf16.msra.mxu0 0
    %2098 = vmatprep.subr.bf16.mxu0 0
    %2099 = vmatpush2.bf16.msra.mxu0 0
    %2100 = vmatprep.subr.bf16.mxu0 0
    %2101 = vmatpush2.bf16.msra.mxu0 0
    %2102 = vmatprep.subr.bf16.mxu0 0
    %2103 = vmatpush2.bf16.msra.mxu0 0
    %2104 = vmatprep.subr.bf16.mxu0 0
    %2105 = vmatpush2.bf16.msra.mxu0 0
    %2106 = vmatprep.subr.bf16.mxu0 0
    %2107 = vmatpush2.bf16.msra.mxu0 0
    %2108 = vmatprep.subr.bf16.mxu0 0
    %2109 = vmatpush2.bf16.msra.mxu0 0
    %2110 = vmatprep.subr.bf16.mxu0 0
    %2111 = vmatpush2.bf16.msra.mxu0 0
    %2112 = vmatprep.mubr.bf16.mxu0 0
    %2113 = vmatmul.mubr.bf16.gmra.mxu0 %v2025
    %v2114 = vpop.f32.mrf.mxu0
    %v2115 = vadd.f32 %v2030, %v2114
    %v2116 = vpop.f32.mrf.mxu0
    %v2117 = vpop.f32.mrf.mxu0
    %v2118 = vpop.f32.mrf.mxu0
    %2119 = vdwg.mxu0
    %v2120 = vmax.f32 %v2115, 0.0
    %v2121 = vld [vmem:[#allocation16] sm:$0xf]
    %v2122 = vld [vmem:[#allocation16 + $0x4] sm:$0xf]
    %v2123 = vld [vmem:[#allocation16 + $0x8] sm:$0xf]
    %v2124 = vld [vmem:[#allocation16 + $0xc] sm:$0xf]
    %v2125 = vld [vmem:[#allocation16 + $0x10] sm:$0xf]
    %v2126 = vld [vmem:[#allocation16 + $0x14] sm:$0xf]
    %v2127 = vld [vmem:[#allocation16 + $0x18] sm:$0xf]
    %v2128 = vld [vmem:[#allocation16 + $0x1c] sm:$0xf]
    %v2129 = vld [vmem:[#allocation16 + $0x20] sm:$0xf]
    %v2130 = vld [vmem:[#allocation16 + $0x24] sm:$0xf]
    %v2131 = vld [vmem:[#allocation16 + $0x28] sm:$0xf]
    %v2132 = vld [vmem:[#allocation16 + $0x2c] sm:$0xf]
    %v2133 = vld [vmem:[#allocation16 + $0x30] sm:$0xf]
    %v2134 = vld [vmem:[#allocation16 + $0x34] sm:$0xf]
    %v2135 = vld [vmem:[#allocation16 + $0x38] sm:$0xf]
    %v2136 = vld [vmem:[#allocation16 + $0x3c] sm:$0xf]
    %v2137 = vld [vmem:[%s16] sm:$0x1]
    %v2138 = vpack.c.bf16 %v2120, %v2120
    %v2140 = vlaneseq
    %v2141 = vshrl.u32 %v2140, 7
    %v2142 = vsub.s32 0, %v2141
    %v2143 = vrot.slane %v2137, %v2142
    %v2161 = vunpack.c.l.b16 %v2121
    %v2162 = vunpack.c.l.b16 %v2122
    %v2163 = vunpack.c.l.b16 %v2123
    %v2164 = vunpack.c.l.b16 %v2124
    %v2165 = vunpack.c.l.b16 %v2125
    %v2166 = vunpack.c.l.b16 %v2126
    %v2167 = vunpack.c.l.b16 %v2127
    %v2168 = vunpack.c.l.b16 %v2128
    %v2169 = vunpack.c.l.b16 %v2129
    %v2170 = vunpack.c.l.b16 %v2130
    %v2171 = vunpack.c.l.b16 %v2131
    %v2172 = vunpack.c.l.b16 %v2132
    %v2173 = vunpack.c.l.b16 %v2133
    %v2174 = vunpack.c.l.b16 %v2134
    %v2175 = vunpack.c.l.b16 %v2135
    %v2176 = vunpack.c.l.b16 %v2136
    %v2177 = vpack.c.b16 %v2162, %v2161
    %v2178 = vpack.c.b16 %v2164, %v2163
    %v2179 = vpack.c.b16 %v2166, %v2165
    %v2180 = vpack.c.b16 %v2168, %v2167
    %v2181 = vpack.c.b16 %v2170, %v2169
    %v2182 = vpack.c.b16 %v2172, %v2171
    %v2183 = vpack.c.b16 %v2174, %v2173
    %v2184 = vpack.c.b16 %v2176, %v2175
    %2193 = vmatprep.subr.bf16.mxu0 0
    %2194 = vmatpush1.bf16.msra.mxu0 %v2184
    %2195 = vmatprep.subr.bf16.mxu0 0
    %2196 = vmatpush1.bf16.msra.mxu0 %v2183
    %2197 = vmatprep.subr.bf16.mxu0 0
    %2198 = vmatpush1.bf16.msra.mxu0 %v2182
    %2199 = vmatprep.subr.bf16.mxu0 0
    %2200 = vmatpush1.bf16.msra.mxu0 %v2181
    %2201 = vmatprep.subr.bf16.mxu0 0
    %2202 = vmatpush1.bf16.msra.mxu0 %v2180
    %2203 = vmatprep.subr.bf16.mxu0 0
    %2204 = vmatpush1.bf16.msra.mxu0 %v2179
    %2205 = vmatprep.subr.bf16.mxu0 0
    %2206 = vmatpush1.bf16.msra.mxu0 %v2178
    %2207 = vmatprep.subr.bf16.mxu0 0
    %2208 = vmatpush1.bf16.msra.mxu0 %v2177
    %2209 = vmatprep.subr.bf16.mxu0 0
    %2210 = vmatpush2.bf16.msra.mxu0 0
    %2211 = vmatprep.subr.bf16.mxu0 0
    %2212 = vmatpush2.bf16.msra.mxu0 0
    %2213 = vmatprep.subr.bf16.mxu0 0
    %2214 = vmatpush2.bf16.msra.mxu0 0
    %2215 = vmatprep.subr.bf16.mxu0 0
    %2216 = vmatpush2.bf16.msra.mxu0 0
    %2217 = vmatprep.subr.bf16.mxu0 0
    %2218 = vmatpush2.bf16.msra.mxu0 0
    %2219 = vmatprep.subr.bf16.mxu0 0
    %2220 = vmatpush2.bf16.msra.mxu0 0
    %2221 = vmatprep.subr.bf16.mxu0 0
    %2222 = vmatpush2.bf16.msra.mxu0 0
    %2223 = vmatprep.subr.bf16.mxu0 0
    %2224 = vmatpush2.bf16.msra.mxu0 0
    %2225 = vmatprep.mubr.bf16.mxu0 0
    %2226 = vmatmul.mubr.bf16.gmra.mxu0 %v2138
    %v2227 = vpop.f32.mrf.mxu0
    %v2228 = vadd.f32 %v2143, %v2227
    %v2229 = vpop.f32.mrf.mxu0
    %v2230 = vpop.f32.mrf.mxu0
    %v2231 = vpop.f32.mrf.mxu0
    %2232 = vdwg.mxu0
    %2233 = vst [vmem:[#allocation17] sm:$0xff] %v2228
    // Predicated region
    $region106: #{tpu_custom_call.1} parent=1 // pred_check
      _
    $region107: #{tpu_custom_call.1} parent=1 // pred_check_branch
      %2235 = sbr.rel (0) target = $region109
    $region108: #{tpu_custom_call.1} parent=1 // pred_region
      %s2237 = ssub.s32 128, 128
      %2238 = vsyncadd [#allocation4], %s2237
      %s2240 = sshll.u32 [#allocation17], 4
      %s2241 = int_to_ptr.vmem [resolvable:$true] %s2240
      %2243 = dma.vmem_to_hbm [thread:$0]  %s2241, 128, %s17, [#allocation4]
    $region109: #{tpu_custom_call.1} parent=1 // pred_fallthru
      _
    // Predicated region
    $region110: #{tpu_custom_call.1} parent=1 // pred_check
      _
    $region111: #{tpu_custom_call.1} parent=1 // pred_check_branch
      %2245 = sbr.rel (0) target = $region113
    $region112: #{tpu_custom_call.1} parent=1 // pred_region
      %2246 = dma.done [#allocation4], 128
    $region113: #{tpu_custom_call.1} parent=1 // pred_fallthru
      _
    %2247 = vsyncpa [#allocation3], 1
    %2248 = vsyncpa [#allocation6], 1
    %2249 = vsyncpa [#allocation9], 1
    %2250 = vsyncpa [#allocation12], 1
    %2251 = vsyncpa [#allocation15], 1
    %2252 = vsyncpa [#allocation4], 1

</llo_original>
